<compile_context>
chip_gen: v7x
topology: tpu7x:2x2x1
jax: 0.10.0
libtpu: 0.0.40
codegen_flags: <defaults>
</compile_context>

<pallas_src>
import functools

import jax
import jax.numpy as jnp
from jax.experimental import pallas as pl
from jax.experimental.pallas import tpu as pltpu


_MATMUL_DTYPE = jnp.bfloat16   # MXU operand dtype (accumulation stays f32)
_ROW_TILE_CAP = 512            # bounded row tile (review: raise from 256)
_LN_EPS = 1e-5


# ------------------------------------------------------------------
# activations (f32 math inside kernels; transcendentals go to the EUP slot)
# ------------------------------------------------------------------
def _gelu(x):
    # TODO(synk): PyTorch nn.GELU() uses the exact erf form; the tanh approximation is used
    # here to guarantee Mosaic lowering.
    return jax.nn.gelu(x, approximate=True)


def _silu(x):
    return x * jax.nn.sigmoid(x)


def _softshrink(x, lam):
    return jnp.where(x > lam, x - lam, jnp.where(x < -lam, x + lam, 0.0))


# ------------------------------------------------------------------
# row tiling helper: bounded tile, multiple of 8, >=2 grid steps when M is large
# ------------------------------------------------------------------
def _row_tiling(M, cap=_ROW_TILE_CAP):
    if M <= 128:
        return M, M                       # single full-extent tile
    hi = min(cap, M // 2)
    hi -= hi % 8
    for tm in range(hi, 7, -8):           # largest multiple-of-8 divisor, >=2 steps
        if M % tm == 0:
            return tm, M
    tm = min(cap, 256)
    Mp = ((M + tm - 1) // tm) * tm        # zero-pad rows; garbage rows sliced off after
    return tm, Mp


def _pad_rows(x, Mp):
    M = x.shape[0]
    if Mp == M:
        return x
    return jnp.pad(x, ((0, Mp - M),) + ((0, 0),) * (x.ndim - 1))


# ------------------------------------------------------------------
# Kernel 1: collapsed encoder+proj 1x1 conv, fused with LN1 of AFNO block 0
#   z = x @ W + b ;  y = LayerNorm(z)
# ------------------------------------------------------------------
def _encode_ln_kernel(x_ref, w_ref, b_ref, g_ref, bt_ref, z_ref, y_ref, *, eps):
    x = x_ref[...].astype(_MATMUL_DTYPE)
    z = jnp.dot(x, w_ref[...], preferred_element_type=jnp.float32) + b_ref[...]
    z_ref[...] = z.astype(z_ref.dtype)
    mu = jnp.mean(z, axis=-1, keepdims=True)
    d = z - mu
    var = jnp.mean(d * d, axis=-1, keepdims=True)
    y_ref[...] = (d * jax.lax.rsqrt(var + eps) * g_ref[...] + bt_ref[...]).astype(y_ref.dtype)


def encode_ln_pallas(x, w, b, g, bt, eps=_LN_EPS):
    M, K = x.shape
    C = w.shape[1]
    tm, Mp = _row_tiling(M)
    xp = _pad_rows(x, Mp)
    row = lambda i: (i, 0)
    rep = lambda i: (0, 0)
    z, y = pl.pallas_call(
        functools.partial(_encode_ln_kernel, eps=eps),
        out_shape=(jax.ShapeDtypeStruct((Mp, C), jnp.float32),
                   jax.ShapeDtypeStruct((Mp, C), jnp.float32)),
        grid=(Mp // tm,),
        in_specs=[pl.BlockSpec((tm, K), row),
                  pl.BlockSpec((K, C), rep),
                  pl.BlockSpec((1, C), rep),
                  pl.BlockSpec((1, C), rep),
                  pl.BlockSpec((1, C), rep)],
        out_specs=(pl.BlockSpec((tm, C), row), pl.BlockSpec((tm, C), row)),
        compiler_params=pltpu.CompilerParams(dimension_semantics=("parallel",)),
    )(xp, w, b.reshape(1, C), g.reshape(1, C), bt.reshape(1, C))
    if Mp != M:
        z, y = z[:M], y[:M]
    return z, y


# ------------------------------------------------------------------
# Kernel 2: AFNO spectral mixing (real-equivalent complex block-diag 2-layer MLP,
# ReLU between layers, softshrink at the end).  Real/imag are separate in/out refs;
# the concat/split happens in VMEM.
# ------------------------------------------------------------------
def _afno_spectral_kernel(xr_ref, xi_ref, w1_ref, b1_ref, w2_ref, b2_ref,
                          or_ref, oi_ref, *, lam):
    C = xr_ref.shape[-1]
    x = jnp.concatenate([xr_ref[...], xi_ref[...]], axis=-1).astype(_MATMUL_DTYPE)
    h = jnp.dot(x, w1_ref[...], preferred_element_type=jnp.float32) + b1_ref[...]
    h = jnp.maximum(h, 0.0)
    o = jnp.dot(h.astype(_MATMUL_DTYPE), w2_ref[...],
                preferred_element_type=jnp.float32) + b2_ref[...]
    o = _softshrink(o, lam)
    or_ref[...] = o[:, :C].astype(or_ref.dtype)
    oi_ref[...] = o[:, C:].astype(oi_ref.dtype)


def afno_spectral_pallas(xr, xi, w1, b1, w2, b2, lam):
    M, C = xr.shape
    C2, H2 = w1.shape
    tm, Mp = _row_tiling(M)
    xrp, xip = _pad_rows(xr, Mp), _pad_rows(xi, Mp)
    row = lambda i: (i, 0)
    rep = lambda i: (0, 0)
    ce = pl.CostEstimate(flops=2 * Mp * (C2 * H2 + H2 * C2), transcendentals=0,
                         bytes_accessed=16 * Mp * C + 2 * (C2 * H2 + H2 * C2))
    o_r, o_i = pl.pallas_call(
        functools.partial(_afno_spectral_kernel, lam=lam),
        out_shape=(jax.ShapeDtypeStruct((Mp, C), jnp.float32),
                   jax.ShapeDtypeStruct((Mp, C), jnp.float32)),
        grid=(Mp // tm,),
        in_specs=[pl.BlockSpec((tm, C), row),
                  pl.BlockSpec((tm, C), row),
                  pl.BlockSpec((C2, H2), rep),
                  pl.BlockSpec((1, H2), rep),
                  pl.BlockSpec((H2, C2), rep),
                  pl.BlockSpec((1, C2), rep)],
        out_specs=(pl.BlockSpec((tm, C), row), pl.BlockSpec((tm, C), row)),
        compiler_params=pltpu.CompilerParams(dimension_semantics=("parallel",)),
        cost_estimate=ce,
    )(xrp, xip, w1, b1.reshape(1, H2), w2, b2.reshape(1, C2))
    if Mp != M:
        o_r, o_i = o_r[:M], o_i[:M]
    return o_r, o_i


# ------------------------------------------------------------------
# Kernel 3: fused AFNO-block tail
#   zin = z + y + filt ; out = zin + fc2(gelu(fc1(LN2(zin))))
#   (optionally) y_next = LN1_{next block}(out) as a second output
# ------------------------------------------------------------------
def _afno_tail_core(z_ref, y_ref, f_ref, g2_ref, bt2_ref, w1_ref, b1_ref, w2_ref, b2_ref, eps):
    zin = (z_ref[...].astype(jnp.float32) + y_ref[...].astype(jnp.float32)
           + f_ref[...].astype(jnp.float32))
    mu = jnp.mean(zin, axis=-1, keepdims=True)
    d = zin - mu
    var = jnp.mean(d * d, axis=-1, keepdims=True)
    h = d * jax.lax.rsqrt(var + eps) * g2_ref[...] + bt2_ref[...]
    h = jnp.dot(h.astype(_MATMUL_DTYPE), w1_ref[...],
                preferred_element_type=jnp.float32) + b1_ref[...]
    h = _gelu(h)
    return zin + jnp.dot(h.astype(_MATMUL_DTYPE), w2_ref[...],
                         preferred_element_type=jnp.float32) + b2_ref[...]


def _afno_tail_kernel(z_ref, y_ref, f_ref, g2_ref, bt2_ref, w1_ref, b1_ref, w2_ref, b2_ref,
                      o_ref, *, eps):
    out = _afno_tail_core(z_ref, y_ref, f_ref, g2_ref, bt2_ref, w1_ref, b1_ref, w2_ref, b2_ref, eps)
    o_ref[...] = out.astype(o_ref.dtype)


def _afno_tail_ln_kernel(z_ref, y_ref, f_ref, g2_ref, bt2_ref, w1_ref, b1_ref, w2_ref, b2_ref,
                         gn_ref, bn_ref, o_ref, yn_ref, *, eps):
    out = _afno_tail_core(z_ref, y_ref, f_ref, g2_ref, bt2_ref, w1_ref, b1_ref, w2_ref, b2_ref, eps)
    o_ref[...] = out.astype(o_ref.dtype)
    mu = jnp.mean(out, axis=-1, keepdims=True)
    d = out - mu
    var = jnp.mean(d * d, axis=-1, keepdims=True)
    yn_ref[...] = (d * jax.lax.rsqrt(var + eps) * gn_ref[...] + bn_ref[...]).astype(yn_ref.dtype)


def afno_tail_pallas(z, y, filt, blk, next_ln, eps=_LN_EPS):
    M, C = z.shape
    Hd = blk["fc1_w"].shape[1]
    tm, Mp = _row_tiling(M)
    zp, yp, fp = _pad_rows(z, Mp), _pad_rows(y, Mp), _pad_rows(filt, Mp)
    row = lambda i: (i, 0)
    rep = lambda i: (0, 0)
    base_specs = [pl.BlockSpec((tm, C), row), pl.BlockSpec((tm, C), row), pl.BlockSpec((tm, C), row),
                  pl.BlockSpec((1, C), rep), pl.BlockSpec((1, C), rep),
                  pl.BlockSpec((C, Hd), rep), pl.BlockSpec((1, Hd), rep),
                  pl.BlockSpec((Hd, C), rep), pl.BlockSpec((1, C), rep)]
    args = [zp, yp, fp, blk["ln2_g"].reshape(1, C), blk["ln2_b"].reshape(1, C),
            blk["fc1_w"], blk["fc1_b"].reshape(1, Hd), blk["fc2_w"], blk["fc2_b"].reshape(1, C)]
    ce = pl.CostEstimate(flops=4 * Mp * C * Hd, transcendentals=Mp * Hd,
                         bytes_accessed=4 * (5 * Mp * C) + 4 * C * Hd)
    cp = pltpu.CompilerParams(dimension_semantics=("parallel",))
    if next_ln is None:
        out = pl.pallas_call(
            functools.partial(_afno_tail_kernel, eps=eps),
            out_shape=jax.ShapeDtypeStruct((Mp, C), z.dtype),
            grid=(Mp // tm,),
            in_specs=base_specs,
            out_specs=pl.BlockSpec((tm, C), row),
            compiler_params=cp, cost_estimate=ce,
        )(*args)
        return (out[:M] if Mp != M else out), None
    gn, bn = next_ln
    out, yn = pl.pallas_call(
        functools.partial(_afno_tail_ln_kernel, eps=eps),
        out_shape=(jax.ShapeDtypeStruct((Mp, C), z.dtype),
                   jax.ShapeDtypeStruct((Mp, C), z.dtype)),
        grid=(Mp // tm,),
        in_specs=base_specs + [pl.BlockSpec((1, C), rep), pl.BlockSpec((1, C), rep)],
        out_specs=(pl.BlockSpec((tm, C), row), pl.BlockSpec((tm, C), row)),
        compiler_params=cp, cost_estimate=ce,
    )(*args, gn.reshape(1, C), bn.reshape(1, C))
    if Mp != M:
        out, yn = out[:M], yn[:M]
    return out, yn


# ------------------------------------------------------------------
# Kernel 4: fused 2x2 avg-pool + silu + first 3x3 conv of the ResBlock.
#   The pooled plane is written (once, silu'd, bf16) into a flattened zero-padded VMEM
#   scratch; each of the 9 taps is a whole-plane dot over a contiguous slab of that scratch
#   (M = Ho*(Wo+2), junk "wrap" rows discarded at the output write).  The raw pooled tensor
#   is emitted as a second output for the shortcut projection of the next kernel.
# ------------------------------------------------------------------
def _pool_conv1_kernel(x_ref, pm_ref, w_ref, b_ref, h_ref, xp_ref, pad_ref):
    Ho, Wo, Cm = h_ref.shape[1], h_ref.shape[2], h_ref.shape[3]
    Wp = Wo + 2
    pm = pm_ref[...]                                     # (Wo, W) f32, rows sum 2x2 -> *0.25
    pad_ref[...] = jnp.zeros_like(pad_ref)
    for r in range(Ho):
        s = x_ref[0, 2 * r].astype(jnp.float32) + x_ref[0, 2 * r + 1].astype(jnp.float32)
        pooled = jnp.dot(pm, s, preferred_element_type=jnp.float32)       # (Wo, Cin)
        xp_ref[0, r] = pooled.astype(xp_ref.dtype)
        pad_ref[pl.ds((r + 1) * Wp + 1, Wo), :] = _silu(pooled).astype(pad_ref.dtype)
    acc = jnp.zeros((Ho * Wp, Cm), jnp.float32) + b_ref[...]
    for k in range(9):
        dy, dx = k // 3, k % 3
        tap = pad_ref[pl.ds(dy * Wp + dx, Ho * Wp), :]                    # shifted plane
        acc = acc + jnp.dot(tap, w_ref[k], preferred_element_type=jnp.float32)
    for r in range(Ho):
        h_ref[0, r] = acc[r * Wp:r * Wp + Wo, :].astype(h_ref.dtype)


def pool_conv1_pallas(x, rp):
    B, H, W, Cin = x.shape
    Ho, Wo = H // 2, W // 2
    Cm = rp["conv1_w"].shape[-1]
    Wp = Wo + 2
    pmat = 0.25 * jnp.repeat(jnp.eye(Wo, dtype=jnp.float32), 2, axis=1)   # (Wo, W)
    img4 = lambda b: (b, 0, 0, 0)
    return pl.pallas_call(
        _pool_conv1_kernel,
        out_shape=(jax.ShapeDtypeStruct((B, Ho, Wo, Cm), x.dtype),
                   jax.ShapeDtypeStruct((B, Ho, Wo, Cin), x.dtype)),
        grid=(B,),
        in_specs=[pl.BlockSpec((1, H, W, Cin), img4),
                  pl.BlockSpec((Wo, W), lambda b: (0, 0)),
                  pl.BlockSpec((9, Cin, Cm), lambda b: (0, 0, 0)),
                  pl.BlockSpec((1, Cm), lambda b: (0, 0))],
        out_specs=(pl.BlockSpec((1, Ho, Wo, Cm), img4),
                   pl.BlockSpec((1, Ho, Wo, Cin), img4)),
        scratch_shapes=[pltpu.VMEM(((Ho + 2) * Wp + 2, Cin), _MATMUL_DTYPE)],
        compiler_params=pltpu.CompilerParams(dimension_semantics=("parallel",)),
    )(x, pmat, rp["conv1_w"], rp["conv1_b"].reshape(1, Cm))


# ------------------------------------------------------------------
# Kernel 5: second 3x3 conv + fused 1x1 shortcut projection + residual add.
#   out = proj1x1(x_pooled) + conv3x3(silu(h1)) + biases
#   Same flattened-plane scheme; the 1x1 projection is just a 10th whole-plane dot.
# ------------------------------------------------------------------
def _conv2_shortcut_kernel(h_ref, x_ref, w_ref, b_ref, pw_ref, pb_ref, o_ref,
                           pad_ref, xf_ref):
    Ho, Wo, Cout = o_ref.shape[1], o_ref.shape[2], o_ref.shape[3]
    Wp = Wo + 2
    pad_ref[...] = jnp.zeros_like(pad_ref)
    xf_ref[...] = jnp.zeros_like(xf_ref)
    for r in range(Ho):
        hr = h_ref[0, r].astype(jnp.float32)
        pad_ref[pl.ds((r + 1) * Wp + 1, Wo), :] = _silu(hr).astype(pad_ref.dtype)
        xf_ref[pl.ds(r * Wp, Wo), :] = x_ref[0, r].astype(xf_ref.dtype)
    acc = jnp.zeros((Ho * Wp, Cout), jnp.float32) + b_ref[...] + pb_ref[...]
    acc = acc + jnp.dot(xf_ref[...], pw_ref[...], preferred_element_type=jnp.float32)
    for k in range(9):
        dy, dx = k // 3, k % 3
        tap = pad_ref[pl.ds(dy * Wp + dx, Ho * Wp), :]
        acc = acc + jnp.dot(tap, w_ref[k], preferred_element_type=jnp.float32)
    for r in range(Ho):
        o_ref[0, r] = acc[r * Wp:r * Wp + Wo, :].astype(o_ref.dtype)


def conv2_shortcut_pallas(h, xp, rp):
    B, Ho, Wo, Cm = h.shape
    Cin = xp.shape[-1]
    Cout = rp["conv2_w"].shape[-1]
    Wp = Wo + 2
    img4 = lambda b: (b, 0, 0, 0)
    return pl.pallas_call(
        _conv2_shortcut_kernel,
        out_shape=jax.ShapeDtypeStruct((B, Ho, Wo, Cout), h.dtype),
        grid=(B,),
        in_specs=[pl.BlockSpec((1, Ho, Wo, Cm), img4),
                  pl.BlockSpec((1, Ho, Wo, Cin), img4),
                  pl.BlockSpec((9, Cm, Cout), lambda b: (0, 0, 0)),
                  pl.BlockSpec((1, Cout), lambda b: (0, 0)),
                  pl.BlockSpec((Cin, Cout), lambda b: (0, 0)),
                  pl.BlockSpec((1, Cout), lambda b: (0, 0))],
        out_specs=pl.BlockSpec((1, Ho, Wo, Cout), img4),
        scratch_shapes=[pltpu.VMEM(((Ho + 2) * Wp + 2, Cm), _MATMUL_DTYPE),
                        pltpu.VMEM((Ho * Wp, Cin), _MATMUL_DTYPE)],
        compiler_params=pltpu.CompilerParams(dimension_semantics=("parallel",)),
    )(h, xp, rp["conv2_w"], rp["conv2_b"].reshape(1, Cout),
      rp["proj_w"], rp["proj_b"].reshape(1, Cout))


# ------------------------------------------------------------------
# AFNO block forward (channels-last, as after the PyTorch permute(0,2,3,1))
#   z, y=LN1(z) come in flattened; out (and y_next=LN1_next(out)) come out flattened.
# ------------------------------------------------------------------
def afno_block_forward(z, y, blk, next_ln, img_shape, sparsity):
    B, H, W, C = img_shape
    # TODO(synk): rfft2/irfft2 have no Pallas equivalent; they stay as XLA FFT ops.
    yf = jnp.fft.rfft2(y.reshape(B, H, W, C), axes=(1, 2), norm="ortho")
    Wf = yf.shape[2]
    xr = jnp.real(yf).reshape(-1, C)
    xi = jnp.imag(yf).reshape(-1, C)
    o_r, o_i = afno_spectral_pallas(xr, xi, blk["sw1"], blk["sb1"], blk["sw2"], blk["sb2"],
                                    sparsity)
    spec = jax.lax.complex(o_r.reshape(B, H, Wf, C), o_i.reshape(B, H, Wf, C))
    filt = jnp.fft.irfft2(spec, s=(H, W), axes=(1, 2), norm="ortho").reshape(-1, C)
    return afno_tail_pallas(z, y, filt.astype(z.dtype), blk, next_ln)


# ------------------------------------------------------------------
# full AFNOConditionerNetCascade forward
# ------------------------------------------------------------------
def afno_conditioner_cascade_forward(params, inputs, cfg):
    """inputs: list of (x_nchw, t_relative); t_relative is unused, exactly as in the
    PyTorch base forward. Returns {(H, W): NCHW tensor} cascade dict."""
    assert len(inputs) == 1, "single-input configuration (input_size_ratios=(1,))"
    x_nchw, _t_rel = inputs[0]
    x = jnp.transpose(x_nchw, (0, 2, 3, 1))                    # NCHW -> NHWC
    B, H, W, Cin = x.shape

    # TODO(synk): the autoencoder is an external module passed to __init__; replaced by a
    # deterministic synthetic encoder whose encode(x)[0] ("mean") is a 1x1 conv.  Encoder
    # and proj are collapsed into a single matmul; LN1 of analysis block 0 is fused in.
    blocks = params["analysis"]
    z, y = encode_ln_pallas(x.reshape(-1, Cin), params["ep_w"], params["ep_b"],
                            blocks[0]["ln1_g"], blocks[0]["ln1_b"])
    C = z.shape[-1]

    # analysis: stack of AFNOBlock2d (LN1 of block b+1 is produced by block b's tail kernel)
    depth = len(blocks)
    for bi, blk in enumerate(blocks):
        next_ln = ((blocks[bi + 1]["ln1_g"], blocks[bi + 1]["ln1_b"])
                   if bi + 1 < depth else None)
        z, y = afno_block_forward(z, y, blk, next_ln, (B, H, W, C), cfg["sparsity_threshold"])

    zimg = z.reshape(B, H, W, C)
    cascade = {(H, W): jnp.transpose(zimg, (0, 3, 1, 2))}      # single input -> fusion skipped
    cur = zimg
    for rp in params["resnet"]:
        h1, xp = pool_conv1_pallas(cur, rp)                    # avg_pool2d fused into conv1
        cur = conv2_shortcut_pallas(h1, xp, rp)
        hh, ww = cur.shape[1], cur.shape[2]
        cascade[(hh, ww)] = jnp.transpose(cur, (0, 3, 1, 2))
    return cascade


# ------------------------------------------------------------------
# deterministic parameter initialization (shapes follow the module __init__)
# ------------------------------------------------------------------
def init_params(key, *, in_channels, encoded_channels, embed_dim,
                analysis_depth, cascade_depth, num_blocks, mlp_ratio):
    keys = iter(jax.random.split(key, 512))

    def nrm(shape, scale=0.02):
        return scale * jax.random.normal(next(keys), shape, jnp.float32)

    def zeros(shape):
        return jnp.zeros(shape, jnp.float32)

    def mm(w):                                 # MXU operand dtype (f32 accumulation in-kernel)
        return w.astype(_MATMUL_DTYPE)

    C = embed_dim
    bs = C // num_blocks
    hidden = int(C * mlp_ratio)

    def block_diag(wb):                        # (num_blocks, bs, bs) -> (C, C)
        return jax.scipy.linalg.block_diag(*[wb[k] for k in range(num_blocks)])

    # collapsed encoder + proj (no activation in between) — products computed in f32
    enc_w = nrm((in_channels, encoded_channels // 2))
    enc_b = zeros((encoded_channels // 2,))
    proj_w = nrm((encoded_channels // 2, C))
    proj_b = zeros((C,))
    p = {
        "ep_w": mm(enc_w @ proj_w),
        "ep_b": enc_b @ proj_w + proj_b,
    }

    analysis = []
    for _ in range(analysis_depth):
        w1 = nrm((2, num_blocks, bs, bs))
        b1 = nrm((2, num_blocks, bs))
        w2 = nrm((2, num_blocks, bs, bs))
        b2 = nrm((2, num_blocks, bs))
        w1r, w1i = block_diag(w1[0]), block_diag(w1[1])
        w2r, w2i = block_diag(w2[0]), block_diag(w2[1])
        # real-equivalent of the complex block-diag MLP:
        #   [xr, xi] @ [[wr, wi], [-wi, wr]] = [xr@wr - xi@wi, xr@wi + xi@wr]
        sw1 = jnp.concatenate([jnp.concatenate([w1r, w1i], 1),
                               jnp.concatenate([-w1i, w1r], 1)], 0)      # (2C, 2C)
        sw2 = jnp.concatenate([jnp.concatenate([w2r, w2i], 1),
                               jnp.concatenate([-w2i, w2r], 1)], 0)      # (2C, 2C)
        analysis.append(dict(
            ln1_g=jnp.ones((C,), jnp.float32), ln1_b=zeros((C,)),
            sw1=mm(sw1), sb1=jnp.concatenate([b1[0].reshape(-1), b1[1].reshape(-1)]),
            sw2=mm(sw2), sb2=jnp.concatenate([b2[0].reshape(-1), b2[1].reshape(-1)]),
            ln2_g=jnp.ones((C,), jnp.float32), ln2_b=zeros((C,)),
            fc1_w=mm(nrm((C, hidden))), fc1_b=zeros((hidden,)),
            fc2_w=mm(nrm((hidden, C))), fc2_b=zeros((C,)),
        ))
    p["analysis"] = analysis

    resnet = []
    ch = C
    for _ in range(cascade_depth - 1):
        cho = 2 * ch
        resnet.append(dict(
            proj_w=mm(nrm((ch, cho))), proj_b=zeros((cho,)),
            conv1_w=mm(nrm((3, 3, ch, cho)).reshape(9, ch, cho)), conv1_b=zeros((cho,)),
            conv2_w=mm(nrm((3, 3, cho, cho)).reshape(9, cho, cho)), conv2_b=zeros((cho,)),
        ))
        ch = cho
    p["resnet"] = resnet
    return p


# ------------------------------------------------------------------
if __name__ == "__main__":
    cfg = dict(
        in_channels=4,
        encoded_channels=16,      # autoencoder.encoded_channels (mean has 8 ch)
        embed_dim=32,
        analysis_depth=2,
        cascade_depth=3,
        num_blocks=8,             # AFNO2D default
        mlp_ratio=4,              # AFNOBlock2d default
        sparsity_threshold=0.01,  # AFNO2D default
    )

    key = jax.random.PRNGKey(0)
    kx, kp = jax.random.split(key)
    B, H, W = 2, 16, 16
    x = jax.random.normal(kx, (B, cfg["in_channels"], H, W), jnp.float32)
    t_relative = jnp.zeros((B,), jnp.float32)  # unused by the forward pass

    params = init_params(
        kp,
        in_channels=cfg["in_channels"],
        encoded_channels=cfg["encoded_channels"],
        embed_dim=cfg["embed_dim"],
        analysis_depth=cfg["analysis_depth"],
        cascade_depth=cfg["cascade_depth"],
        num_blocks=cfg["num_blocks"],
        mlp_ratio=cfg["mlp_ratio"],
    )

    cascade = afno_conditioner_cascade_forward(params, [(x, t_relative)], cfg)
    cascade = jax.block_until_ready(cascade)

    # shape checks: channels double, spatial halves at each cascade level
    assert cascade[(16, 16)].shape == (B, 32, 16, 16)
    assert cascade[(8, 8)].shape == (B, 64, 8, 8)
    assert cascade[(4, 4)].shape == (B, 128, 4, 4)
    assert all(bool(jnp.all(jnp.isfinite(v))) for v in cascade.values())

    print("KERNEL_OK")
</pallas_src>

<mosaic_0001>
module attributes {stable_mosaic.version = 11 : i64} {
  func.func @_encode_ln_kernel(%arg0: i32, %arg1: memref<256x4xf32, #tpu.memory_space<vmem>>, %arg2: memref<4x32xbf16, #tpu.memory_space<vmem>>, %arg3: memref<1x32xf32, #tpu.memory_space<vmem>>, %arg4: memref<1x32xf32, #tpu.memory_space<vmem>>, %arg5: memref<1x32xf32, #tpu.memory_space<vmem>>, %arg6: memref<256x32xf32, #tpu.memory_space<vmem>>, %arg7: memref<256x32xf32, #tpu.memory_space<vmem>>) attributes {dimension_semantics = [#tpu.dimension_semantics<parallel>], iteration_bounds = array<i64: 2>, scalar_prefetch = 0 : i64, scratch_operands = 0 : i64, tpu.core_type = #tpu.core_type<tc>, window_params = [{transform_indices = @transform_0, window_bounds = array<i64: 256, 4>}, {pipeline_mode = #tpu.pipeline_mode<synchronous>, transform_indices = @transform_1, window_bounds = array<i64: 4, 32>}, {pipeline_mode = #tpu.pipeline_mode<synchronous>, transform_indices = @transform_2, window_bounds = array<i64: 1, 32>}, {pipeline_mode = #tpu.pipeline_mode<synchronous>, transform_indices = @transform_3, window_bounds = array<i64: 1, 32>}, {pipeline_mode = #tpu.pipeline_mode<synchronous>, transform_indices = @transform_4, window_bounds = array<i64: 1, 32>}, {transform_indices = @transform_5, window_bounds = array<i64: 256, 32>}, {transform_indices = @transform_6, window_bounds = array<i64: 256, 32>}]} {
    %c0 = arith.constant 0 : index
    %c0_0 = arith.constant 0 : index
    %0 = vector.load %arg1[%c0, %c0_0] : memref<256x4xf32, #tpu.memory_space<vmem>>, vector<256x4xf32>
    %1 = arith.truncf %0 : vector<256x4xf32> to vector<256x4xbf16>
    %c0_1 = arith.constant 0 : index
    %c0_2 = arith.constant 0 : index
    %2 = vector.load %arg2[%c0_1, %c0_2] : memref<4x32xbf16, #tpu.memory_space<vmem>>, vector<4x32xbf16>
    %cst = arith.constant dense<0.000000e+00> : vector<256x32xf32>
    %3 = tpu.matmul %1, %2, %cst {dimension_numbers = #tpu.dot_dimension_numbers<[1], [0], [0], [1], [0, 0, 1, 1], [], []>} : vector<256x4xbf16>, vector<4x32xbf16>, vector<256x32xf32> -> vector<256x32xf32>
    %c0_3 = arith.constant 0 : index
    %c0_4 = arith.constant 0 : index
    %4 = vector.load %arg3[%c0_3, %c0_4] : memref<1x32xf32, #tpu.memory_space<vmem>>, vector<1x32xf32>
    %5 = vector.broadcast %4 : vector<1x32xf32> to vector<256x32xf32>
    %6 = arith.addf %3, %5 : vector<256x32xf32>
    %c0_5 = arith.constant 0 : index
    %c0_6 = arith.constant 0 : index
    %7 = vector.load %arg6[%c0_5, %c0_6] : memref<256x32xf32, #tpu.memory_space<vmem>>, vector<256x32xf32>
    tpu.vector_store %arg6[%c0_5, %c0_6], %6 {strides = array<i32>} : memref<256x32xf32, #tpu.memory_space<vmem>>, vector<256x32xf32>,
    %cst_7 = arith.constant dense<0.000000e+00> : vector<256xf32>
    %8 = vector.multi_reduction <add>, %6, %cst_7 [1] : vector<256x32xf32> to vector<256xf32>
    %9 = vector.shape_cast %8 : vector<256xf32> to vector<256x1xf32>
    %cst_8 = arith.constant 3.200000e+01 : f32
    %10 = vector.broadcast %cst_8 : f32 to vector<256x1xf32>
    %11 = arith.divf %9, %10 : vector<256x1xf32>
    %12 = vector.broadcast %11 : vector<256x1xf32> to vector<256x32xf32>
    %13 = arith.subf %6, %12 : vector<256x32xf32>
    %14 = arith.mulf %13, %13 : vector<256x32xf32>
    %cst_9 = arith.constant dense<0.000000e+00> : vector<256xf32>
    %15 = vector.multi_reduction <add>, %14, %cst_9 [1] : vector<256x32xf32> to vector<256xf32>
    %16 = vector.shape_cast %15 : vector<256xf32> to vector<256x1xf32>
    %cst_10 = arith.constant 3.200000e+01 : f32
    %17 = vector.broadcast %cst_10 : f32 to vector<256x1xf32>
    %18 = arith.divf %16, %17 : vector<256x1xf32>
    %cst_11 = arith.constant 9.99999974E-6 : f32
    %19 = vector.broadcast %cst_11 : f32 to vector<256x1xf32>
    %20 = arith.addf %18, %19 : vector<256x1xf32>
    %21 = math.rsqrt %20 : vector<256x1xf32>
    %22 = vector.broadcast %21 : vector<256x1xf32> to vector<256x32xf32>
    %23 = arith.mulf %13, %22 : vector<256x32xf32>
    %c0_12 = arith.constant 0 : index
    %c0_13 = arith.constant 0 : index
    %24 = vector.load %arg4[%c0_12, %c0_13] : memref<1x32xf32, #tpu.memory_space<vmem>>, vector<1x32xf32>
    %25 = vector.broadcast %24 : vector<1x32xf32> to vector<256x32xf32>
    %26 = arith.mulf %23, %25 : vector<256x32xf32>
    %c0_14 = arith.constant 0 : index
    %c0_15 = arith.constant 0 : index
    %27 = vector.load %arg5[%c0_14, %c0_15] : memref<1x32xf32, #tpu.memory_space<vmem>>, vector<1x32xf32>
    %28 = vector.broadcast %27 : vector<1x32xf32> to vector<256x32xf32>
    %29 = arith.addf %26, %28 : vector<256x32xf32>
    %c0_16 = arith.constant 0 : index
    %c0_17 = arith.constant 0 : index
    %30 = vector.load %arg7[%c0_16, %c0_17] : memref<256x32xf32, #tpu.memory_space<vmem>>, vector<256x32xf32>
    tpu.vector_store %arg7[%c0_16, %c0_17], %29 {strides = array<i32>} : memref<256x32xf32, #tpu.memory_space<vmem>>, vector<256x32xf32>,
    return
  }
  func.func @transform_0(%arg0: i32) -> (i32, i32) {
    %c0_i32 = arith.constant 0 : i32
    %c0_i32_0 = arith.constant 0 : i32
    return %arg0, %c0_i32 : i32, i32
  }
  func.func @transform_1(%arg0: i32) -> (i32, i32) {
    %c0_i32 = arith.constant 0 : i32
    %c0_i32_0 = arith.constant 0 : i32
    %c0_i32_1 = arith.constant 0 : i32
    return %c0_i32, %c0_i32_0 : i32, i32
  }
  func.func @transform_2(%arg0: i32) -> (i32, i32) {
    %c0_i32 = arith.constant 0 : i32
    %c0_i32_0 = arith.constant 0 : i32
    %c0_i32_1 = arith.constant 0 : i32
    return %c0_i32, %c0_i32_0 : i32, i32
  }
  func.func @transform_3(%arg0: i32) -> (i32, i32) {
    %c0_i32 = arith.constant 0 : i32
    %c0_i32_0 = arith.constant 0 : i32
    %c0_i32_1 = arith.constant 0 : i32
    return %c0_i32, %c0_i32_0 : i32, i32
  }
  func.func @transform_4(%arg0: i32) -> (i32, i32) {
    %c0_i32 = arith.constant 0 : i32
    %c0_i32_0 = arith.constant 0 : i32
    %c0_i32_1 = arith.constant 0 : i32
    return %c0_i32, %c0_i32_0 : i32, i32
  }
  func.func @transform_5(%arg0: i32) -> (i32, i32) {
    %c0_i32 = arith.constant 0 : i32
    %c0_i32_0 = arith.constant 0 : i32
    return %arg0, %c0_i32 : i32, i32
  }
  func.func @transform_6(%arg0: i32) -> (i32, i32) {
    %c0_i32 = arith.constant 0 : i32
    %c0_i32_0 = arith.constant 0 : i32
    return %arg0, %c0_i32 : i32, i32
  }
}

</mosaic_0001>

<llo_original>
// kernel: tpu_custom_call.1
$region0: #{tpu_custom_call.1}
  #allocation0 [shape = 'u32[]', space=smem, size = 0x4, offset = 0x4, fixed_abs, tag = 'smem constant byte address 0x4 - core index']
  #allocation1 [shape = 'u32[144,128]{1,0:T(1,128)}', space=vmem, size = 0x12000, scoped, tag = 'internal scratch']
  %s0 = inlined_call_operand.vmem [shape: f32[512,4], index: 0, kind: input, shape index: {}]
  %s1 = inlined_call_operand.vmem [shape: bf16[4,32], index: 1, kind: input, shape index: {}]
  %s2 = inlined_call_operand.vmem [shape: f32[1,32], index: 2, kind: input, shape index: {}]
  %s3 = inlined_call_operand.vmem [shape: f32[1,32], index: 3, kind: input, shape index: {}]
  %s4 = inlined_call_operand.vmem [shape: f32[1,32], index: 4, kind: input, shape index: {}]
  %s5 = inlined_call_operand.vmem [shape: f32[512,32], index: 5, kind: output, shape index: {0}]
  %s6 = inlined_call_operand.vmem [shape: f32[512,32], index: 6, kind: output, shape index: {1}]
  %7 = xla_tuple %s5, %s6
  %s8 = sld [smem:[#allocation0]]
  $region61: #{tpu_custom_call.1} parent=0
    _
  %s10 = ssub.s32 1, %s8
  %s11 = scalar_select 0, %s10, %s8
  loop: start=0, step=1, limit=4
  $region2: #{tpu_custom_call.1} parent=0 // loop_pre_header
    _
  $region3: #{tpu_custom_call.1} parent=0 // loop_header
    %s13 = sphi 0, %s17
    %p14 = scmp.ge.s32.totalorder %s13, 4
    %s23 = sphi 0, %s25
    %s26 = sphi 0, %s23
    %s27 = sphi 0, %s26
    %s43 = sphi 0, %s27
    %s47 = sphi 0, %s47
    %s49 = sphi 0, %s47
    %s50 = sphi 0, %s49
    %s64 = sphi 0, %s50
    %s68 = sphi 0, %s68
    %s70 = sphi 0, %s68
    %s71 = sphi 0, %s70
    %s85 = sphi 0, %s71
    %s89 = sphi 0, %s89
    %s91 = sphi 0, %s89
    %s92 = sphi 0, %s91
    %s106 = sphi 0, %s92
    %s110 = sphi 0, %s110
    %s112 = sphi 0, %s110
    %s113 = sphi 0, %s112
    %s127 = sphi 0, %s113
    %s133 = sphi 0, %s135
    %s136 = sphi 0, %s133
    %s137 = sphi 0, %s136
    %s153 = sphi 0, %s137
    %s159 = sphi 0, %s161
    %s162 = sphi 0, %s159
    %s163 = sphi 0, %s162
    %s179 = sphi 0, %s163
  $region4: #{tpu_custom_call.1} parent=0 // loop_header_branch
    %16 = sbr.rel (%p14) target = $region8
  $region5: #{tpu_custom_call.1} parent=0 // loop_body
    %s18 = ssub.s32 %s13, 1
    %s19 = ssub.s32 %s13, 2
    %s20 = sadd.s32 %s13, 1
    %s21 = ssub.s32 %s13, %s20
    %p22 = scmp.eq.s32.totalorder %s21, 0
    %s24 = sadd.s32 %s23, 1
    %s25 = scalar_select %p22, %s23, %s24
    %p28 = pneg %p22
    %p29 = scmp.eq.s32.totalorder %s13, 1
    %p30 = por %p28, %p29
    %p31 = scmp.ne.s32.totalorder %s23, %s26
    %p32 = scmp.eq.s32.totalorder %s13, 0
    %p33 = por %p31, %p32
    %p34 = scmp.ne.s32.totalorder %s23, %s26
    %p35 = scmp.eq.s32.totalorder %s18, 1
    %p36 = por %p34, %p35
    %p37 = scmp.ne.s32.totalorder %s26, %s27
    %p38 = scmp.eq.s32.totalorder %s18, 0
    %p39 = por %p37, %p38
    %p40 = scmp.ne.s32.totalorder %s26, %s27
    %p41 = scmp.eq.s32.totalorder %s19, 1
    %p42 = por %p40, %p41
    %p44 = scmp.ne.s32.totalorder %s27, %s43
    %p45 = scmp.eq.s32.totalorder %s19, 0
    %p46 = por %p44, %p45
    %s48 = sadd.s32 %s47, 1
    %p51 = scmp.eq.s32.totalorder %s13, 1
    %p52 = scmp.ne.s32.totalorder %s47, %s49
    %p53 = scmp.eq.s32.totalorder %s13, 0
    %p54 = por %p52, %p53
    %p55 = scmp.ne.s32.totalorder %s47, %s49
    %p56 = scmp.eq.s32.totalorder %s18, 1
    %p57 = por %p55, %p56
    %p58 = scmp.ne.s32.totalorder %s49, %s50
    %p59 = scmp.eq.s32.totalorder %s18, 0
    %p60 = por %p58, %p59
    %p61 = scmp.ne.s32.totalorder %s49, %s50
    %p62 = scmp.eq.s32.totalorder %s19, 1
    %p63 = por %p61, %p62
    %p65 = scmp.ne.s32.totalorder %s50, %s64
    %p66 = scmp.eq.s32.totalorder %s19, 0
    %p67 = por %p65, %p66
    %s69 = sadd.s32 %s68, 1
    %p72 = scmp.eq.s32.totalorder %s13, 1
    %p73 = scmp.ne.s32.totalorder %s68, %s70
    %p74 = scmp.eq.s32.totalorder %s13, 0
    %p75 = por %p73, %p74
    %p76 = scmp.ne.s32.totalorder %s68, %s70
    %p77 = scmp.eq.s32.totalorder %s18, 1
    %p78 = por %p76, %p77
    %p79 = scmp.ne.s32.totalorder %s70, %s71
    %p80 = scmp.eq.s32.totalorder %s18, 0
    %p81 = por %p79, %p80
    %p82 = scmp.ne.s32.totalorder %s70, %s71
    %p83 = scmp.eq.s32.totalorder %s19, 1
    %p84 = por %p82, %p83
    %p86 = scmp.ne.s32.totalorder %s71, %s85
    %p87 = scmp.eq.s32.totalorder %s19, 0
    %p88 = por %p86, %p87
    %s90 = sadd.s32 %s89, 1
    %p93 = scmp.eq.s32.totalorder %s13, 1
    %p94 = scmp.ne.s32.totalorder %s89, %s91
    %p95 = scmp.eq.s32.totalorder %s13, 0
    %p96 = por %p94, %p95
    %p97 = scmp.ne.s32.totalorder %s89, %s91
    %p98 = scmp.eq.s32.totalorder %s18, 1
    %p99 = por %p97, %p98
    %p100 = scmp.ne.s32.totalorder %s91, %s92
    %p101 = scmp.eq.s32.totalorder %s18, 0
    %p102 = por %p100, %p101
    %p103 = scmp.ne.s32.totalorder %s91, %s92
    %p104 = scmp.eq.s32.totalorder %s19, 1
    %p105 = por %p103, %p104
    %p107 = scmp.ne.s32.totalorder %s92, %s106
    %p108 = scmp.eq.s32.totalorder %s19, 0
    %p109 = por %p107, %p108
    %s111 = sadd.s32 %s110, 1
    %p114 = scmp.eq.s32.totalorder %s13, 1
    %p115 = scmp.ne.s32.totalorder %s110, %s112
    %p116 = scmp.eq.s32.totalorder %s13, 0
    %p117 = por %p115, %p116
    %p118 = scmp.ne.s32.totalorder %s110, %s112
    %p119 = scmp.eq.s32.totalorder %s18, 1
    %p120 = por %p118, %p119
    %p121 = scmp.ne.s32.totalorder %s112, %s113
    %p122 = scmp.eq.s32.totalorder %s18, 0
    %p123 = por %p121, %p122
    %p124 = scmp.ne.s32.totalorder %s112, %s113
    %p125 = scmp.eq.s32.totalorder %s19, 1
    %p126 = por %p124, %p125
    %p128 = scmp.ne.s32.totalorder %s113, %s127
    %p129 = scmp.eq.s32.totalorder %s19, 0
    %p130 = por %p128, %p129
    %s131 = ssub.s32 %s13, %s20
    %p132 = scmp.eq.s32.totalorder %s131, 0
    %s134 = sadd.s32 %s133, 1
    %s135 = scalar_select %p132, %s133, %s134
    %p138 = pneg %p132
    %p139 = scmp.eq.s32.totalorder %s13, 1
    %p140 = por %p138, %p139
    %p141 = scmp.ne.s32.totalorder %s133, %s136
    %p142 = scmp.eq.s32.totalorder %s13, 0
    %p143 = por %p141, %p142
    %p144 = scmp.ne.s32.totalorder %s133, %s136
    %p145 = scmp.eq.s32.totalorder %s18, 1
    %p146 = por %p144, %p145
    %p147 = scmp.ne.s32.totalorder %s136, %s137
    %p148 = scmp.eq.s32.totalorder %s18, 0
    %p149 = por %p147, %p148
    %p150 = scmp.ne.s32.totalorder %s136, %s137
    %p151 = scmp.eq.s32.totalorder %s19, 1
    %p152 = por %p150, %p151
    %p154 = scmp.ne.s32.totalorder %s137, %s153
    %p155 = scmp.eq.s32.totalorder %s19, 0
    %p156 = por %p154, %p155
    %s157 = ssub.s32 %s13, %s20
    %p158 = scmp.eq.s32.totalorder %s157, 0
    %s160 = sadd.s32 %s159, 1
    %s161 = scalar_select %p158, %s159, %s160
    %p164 = pneg %p158
    %p165 = scmp.eq.s32.totalorder %s13, 1
    %p166 = por %p164, %p165
    %p167 = scmp.ne.s32.totalorder %s159, %s162
    %p168 = scmp.eq.s32.totalorder %s13, 0
    %p169 = por %p167, %p168
    %p170 = scmp.ne.s32.totalorder %s159, %s162
    %p171 = scmp.eq.s32.totalorder %s18, 1
    %p172 = por %p170, %p171
    %p173 = scmp.ne.s32.totalorder %s162, %s163
    %p174 = scmp.eq.s32.totalorder %s18, 0
    %p175 = por %p173, %p174
    %p176 = scmp.ne.s32.totalorder %s162, %s163
    %p177 = scmp.eq.s32.totalorder %s19, 1
    %p178 = por %p176, %p177
    %p180 = scmp.ne.s32.totalorder %s163, %s179
    %p181 = scmp.eq.s32.totalorder %s19, 0
    %p182 = por %p180, %p181
    %p183 = scmp.le.s32.totalorder 1, %s13
    %p184 = scmp.lt.s32.totalorder %s13, 3
    %p185 = pnand %p183, %p184
    %p186 = pneg %p185
    // Predicated region
    $region9: #{tpu_custom_call.1} parent=5 // pred_check
      _
    $region10: #{tpu_custom_call.1} parent=5 // pred_check_branch
      %188 = sbr.rel (%p185) target = $region12
    $region11: #{tpu_custom_call.1} parent=5 // pred_region
      %s189 = ssub.s32 %s13, 1
      // Predicated region
      $region13: #{tpu_custom_call.1} parent=11 // pred_check
        %p190 = pneg %p60
      $region14: #{tpu_custom_call.1} parent=11 // pred_check_branch
        %192 = sbr.rel (%p190) target = $region16
      $region15: #{tpu_custom_call.1} parent=11 // pred_region
        _
      $region16: #{tpu_custom_call.1} parent=11 // pred_fallthru
        _
      // Predicated region
      $region17: #{tpu_custom_call.1} parent=11 // pred_check
        %p193 = pneg %p81
      $region18: #{tpu_custom_call.1} parent=11 // pred_check_branch
        %195 = sbr.rel (%p193) target = $region20
      $region19: #{tpu_custom_call.1} parent=11 // pred_region
        _
      $region20: #{tpu_custom_call.1} parent=11 // pred_fallthru
        _
      // Predicated region
      $region21: #{tpu_custom_call.1} parent=11 // pred_check
        %p196 = pneg %p102
      $region22: #{tpu_custom_call.1} parent=11 // pred_check_branch
        %198 = sbr.rel (%p196) target = $region24
      $region23: #{tpu_custom_call.1} parent=11 // pred_region
        _
      $region24: #{tpu_custom_call.1} parent=11 // pred_fallthru
        _
      // Predicated region
      $region25: #{tpu_custom_call.1} parent=11 // pred_check
        %p199 = pneg %p123
      $region26: #{tpu_custom_call.1} parent=11 // pred_check_branch
        %201 = sbr.rel (%p199) target = $region28
      $region27: #{tpu_custom_call.1} parent=11 // pred_region
        _
      $region28: #{tpu_custom_call.1} parent=11 // pred_fallthru
        _
    $region12: #{tpu_custom_call.1} parent=5 // pred_fallthru
      _
    %p202 = scmp.lt.s32.totalorder %s13, 2
    // Predicated region
    $region29: #{tpu_custom_call.1} parent=5 // pred_check
      %p203 = pneg %p202
    $region30: #{tpu_custom_call.1} parent=5 // pred_check_branch
      %205 = sbr.rel (%p203) target = $region32
    $region31: #{tpu_custom_call.1} parent=5 // pred_region
      // Predicated region
      $region33: #{tpu_custom_call.1} parent=31 // pred_check
        %p206 = pneg %p33
      $region34: #{tpu_custom_call.1} parent=31 // pred_check_branch
        %208 = sbr.rel (%p206) target = $region36
      $region35: #{tpu_custom_call.1} parent=31 // pred_region
        %s209 = smul.u32 32, %s13
        %p210 = scmp.lt.s32.totalorder %s209, 63
        %s211 = scalar_select %p210, %s209, 63
        %s212 = smul.addr %s211, 8
        %s213 = scalar_lea.vmem %s0, %s212
        %s214 = smul.u32 32, %s13
      $region36: #{tpu_custom_call.1} parent=31 // pred_fallthru
        _
    $region32: #{tpu_custom_call.1} parent=5 // pred_fallthru
      _
    %p215 = scmp.le.s32.totalorder 1, %s13
    %p216 = scmp.lt.s32.totalorder %s13, 3
    %p217 = pnand %p215, %p216
    %p218 = pneg %p217
    // Predicated region
    $region37: #{tpu_custom_call.1} parent=5 // pred_check
      _
    $region38: #{tpu_custom_call.1} parent=5 // pred_check_branch
      %220 = sbr.rel (%p217) target = $region40
    $region39: #{tpu_custom_call.1} parent=5 // pred_region
      %s221 = ssub.s32 %s13, 1
      %s222 = smul.u32 32, %s18
      %p223 = scmp.lt.s32.totalorder %s222, 63
      %s224 = scalar_select %p223, %s222, 63
      %s225 = smul.addr %s224, 8
      %s226 = scalar_lea.vmem %s0, %s225
      %p227 = pneg %p39
      %p228 = pneg %p36
      %p229 = pneg %p60
      %p230 = pneg %p57
      %p231 = pneg %p81
      %p232 = pneg %p78
      %p233 = pneg %p102
      %p234 = pneg %p99
      %p235 = pneg %p123
      %p236 = pneg %p120
      %p237 = pneg %p149
      %p238 = pneg %p146
      %s239 = smul.u32 32, %s18
      %p240 = scmp.lt.s32.totalorder %s239, 63
      %s241 = scalar_select %p240, %s239, 63
      %s242 = smul.addr %s241, 8
      %s243 = scalar_lea.vmem %s5, %s242
      %p244 = pneg %p175
      %p245 = pneg %p172
      %s246 = smul.u32 32, %s18
      %p247 = scmp.lt.s32.totalorder %s246, 63
      %s248 = scalar_select %p247, %s246, 63
      %s249 = smul.addr %s248, 8
      %s250 = scalar_lea.vmem %s6, %s249
      %s251 = smul.u32 32, %s18
      %p252 = scmp.lt.s32.totalorder %s251, 63
      %s253 = scalar_select %p252, %s251, 63
      %s254 = smul.addr %s253, 8
      %s255 = scalar_lea.vmem %s0, %s254
      %s256 = smul.u32 32, %s18
      %s257 = smul.u32 32, %s18
      %p258 = scmp.lt.s32.totalorder %s257, 63
      %s259 = scalar_select %p258, %s257, 63
      %s260 = smul.addr %s259, 8
      %s261 = scalar_lea.vmem %s5, %s260
      %s262 = smul.u32 32, %s18
      %s263 = smul.u32 32, %s18
      %p264 = scmp.lt.s32.totalorder %s263, 63
      %s265 = scalar_select %p264, %s263, 63
      %s266 = smul.addr %s265, 8
      %s267 = scalar_lea.vmem %s6, %s266
      %s268 = smul.u32 32, %s18
      %v270 = vld [vmem:[%s255] sm:$0xff]
      %v271 = vld [vmem:[%s255 + $0x8] sm:$0xff]
      %v272 = vld [vmem:[%s255 + $0x10] sm:$0xff]
      %v273 = vld [vmem:[%s255 + $0x18] sm:$0xff]
      %v274 = vld [vmem:[%s255 + $0x20] sm:$0xff]
      %v275 = vld [vmem:[%s255 + $0x28] sm:$0xff]
      %v276 = vld [vmem:[%s255 + $0x30] sm:$0xff]
      %v277 = vld [vmem:[%s255 + $0x38] sm:$0xff]
      %v278 = vld [vmem:[%s255 + $0x40] sm:$0xff]
      %v279 = vld [vmem:[%s255 + $0x48] sm:$0xff]
      %v280 = vld [vmem:[%s255 + $0x50] sm:$0xff]
      %v281 = vld [vmem:[%s255 + $0x58] sm:$0xff]
      %v282 = vld [vmem:[%s255 + $0x60] sm:$0xff]
      %v283 = vld [vmem:[%s255 + $0x68] sm:$0xff]
      %v284 = vld [vmem:[%s255 + $0x70] sm:$0xff]
      %v285 = vld [vmem:[%s255 + $0x78] sm:$0xff]
      %v286 = vld [vmem:[%s255 + $0x80] sm:$0xff]
      %v287 = vld [vmem:[%s255 + $0x88] sm:$0xff]
      %v288 = vld [vmem:[%s255 + $0x90] sm:$0xff]
      %v289 = vld [vmem:[%s255 + $0x98] sm:$0xff]
      %v290 = vld [vmem:[%s255 + $0xa0] sm:$0xff]
      %v291 = vld [vmem:[%s255 + $0xa8] sm:$0xff]
      %v292 = vld [vmem:[%s255 + $0xb0] sm:$0xff]
      %v293 = vld [vmem:[%s255 + $0xb8] sm:$0xff]
      %v294 = vld [vmem:[%s255 + $0xc0] sm:$0xff]
      %v295 = vld [vmem:[%s255 + $0xc8] sm:$0xff]
      %v296 = vld [vmem:[%s255 + $0xd0] sm:$0xff]
      %v297 = vld [vmem:[%s255 + $0xd8] sm:$0xff]
      %v298 = vld [vmem:[%s255 + $0xe0] sm:$0xff]
      %v299 = vld [vmem:[%s255 + $0xe8] sm:$0xff]
      %v300 = vld [vmem:[%s255 + $0xf0] sm:$0xff]
      %v301 = vld [vmem:[%s255 + $0xf8] sm:$0xff]
      %v302 = vpack.c.bf16 %v271, %v270
      %v303 = vpack.c.bf16 %v273, %v272
      %v304 = vpack.c.bf16 %v275, %v274
      %v305 = vpack.c.bf16 %v277, %v276
      %v306 = vpack.c.bf16 %v279, %v278
      %v307 = vpack.c.bf16 %v281, %v280
      %v308 = vpack.c.bf16 %v283, %v282
      %v309 = vpack.c.bf16 %v285, %v284
      %v310 = vpack.c.bf16 %v287, %v286
      %v311 = vpack.c.bf16 %v289, %v288
      %v312 = vpack.c.bf16 %v291, %v290
      %v313 = vpack.c.bf16 %v293, %v292
      %v314 = vpack.c.bf16 %v295, %v294
      %v315 = vpack.c.bf16 %v297, %v296
      %v316 = vpack.c.bf16 %v299, %v298
      %v317 = vpack.c.bf16 %v301, %v300
      %v318 = vld [vmem:[%s1] sm:$0x3]
      %v319 = vld [vmem:[%s2] sm:$0x1]
      %v321 = vlaneseq
      %v322 = vshrl.u32 %v321, 7
      %v323 = vsub.s32 0, %v322
      %v324 = vrot.slane %v319, %v323
      %vm326 = vcmask 31744
      %v328 = vsel %vm326, %v302, 0
      %v331 = vsel %vm326, %v303, 0
      %v334 = vsel %vm326, %v304, 0
      %v337 = vsel %vm326, %v305, 0
      %v340 = vsel %vm326, %v306, 0
      %v343 = vsel %vm326, %v307, 0
      %v346 = vsel %vm326, %v308, 0
      %v349 = vsel %vm326, %v309, 0
      %v352 = vsel %vm326, %v310, 0
      %v355 = vsel %vm326, %v311, 0
      %v358 = vsel %vm326, %v312, 0
      %v361 = vsel %vm326, %v313, 0
      %v364 = vsel %vm326, %v314, 0
      %v367 = vsel %vm326, %v315, 0
      %v370 = vsel %vm326, %v316, 0
      %v373 = vsel %vm326, %v317, 0
      %vm375 = vcmask 1041408
      %v377 = vsel %vm375, %v318, 0
      %379 = vmatprep.subr.bf16.mxu0 0
      %380 = vmatpush1.bf16.msra.mxu0 %v377
      %381 = vmatprep.subr.bf16.mxu0 0
      %382 = vmatpush1.bf16.msra.mxu0 0
      %383 = vmatprep.subr.bf16.mxu0 0
      %384 = vmatpush1.bf16.msra.mxu0 0
      %385 = vmatprep.subr.bf16.mxu0 0
      %386 = vmatpush1.bf16.msra.mxu0 0
      %387 = vmatprep.subr.bf16.mxu0 0
      %388 = vmatpush1.bf16.msra.mxu0 0
      %389 = vmatprep.subr.bf16.mxu0 0
      %390 = vmatpush1.bf16.msra.mxu0 0
      %391 = vmatprep.subr.bf16.mxu0 0
      %392 = vmatpush1.bf16.msra.mxu0 0
      %393 = vmatprep.subr.bf16.mxu0 0
      %394 = vmatpush1.bf16.msra.mxu0 0
      %395 = vmatprep.subr.bf16.mxu0 0
      %396 = vmatpush1.bf16.msra.mxu0 0
      %397 = vmatprep.subr.bf16.mxu0 0
      %398 = vmatpush1.bf16.msra.mxu0 0
      %399 = vmatprep.subr.bf16.mxu0 0
      %400 = vmatpush1.bf16.msra.mxu0 0
      %401 = vmatprep.subr.bf16.mxu0 0
      %402 = vmatpush1.bf16.msra.mxu0 0
      %403 = vmatprep.subr.bf16.mxu0 0
      %404 = vmatpush1.bf16.msra.mxu0 0
      %405 = vmatprep.subr.bf16.mxu0 0
      %406 = vmatpush1.bf16.msra.mxu0 0
      %407 = vmatprep.subr.bf16.mxu0 0
      %408 = vmatpush1.bf16.msra.mxu0 0
      %409 = vmatprep.subr.bf16.mxu0 0
      %410 = vmatpush1.bf16.msra.mxu0 0
      %411 = vmatprep.mubr.bf16.mxu0 0
      %412 = vmatmul.mubr.bf16.gmra.mrb[0].mxu0 %v328
      %v413 = vpop.f32.mrb[0].mxu0
      %v414 = vadd.f32 %v324, %v413
      %v415 = vpop.f32.mrb[0].mxu0
      %v416 = vpop.f32.mrb[0].mxu0
      %v417 = vadd.f32 %v324, %v416
      %v418 = vpop.f32.mrb[0].mxu0
      %419 = vmatprep.mubr.bf16.mxu0 0
      %420 = vmatmul.mubr.bf16.gmra.mrb[0].mxu0 %v331
      %v421 = vpop.f32.mrb[0].mxu0
      %v422 = vadd.f32 %v324, %v421
      %v423 = vpop.f32.mrb[0].mxu0
      %v424 = vpop.f32.mrb[0].mxu0
      %v425 = vadd.f32 %v324, %v424
      %v426 = vpop.f32.mrb[0].mxu0
      %427 = vmatprep.mubr.bf16.mxu0 0
      %428 = vmatmul.mubr.bf16.gmra.mrb[0].mxu0 %v334
      %v429 = vpop.f32.mrb[0].mxu0
      %v430 = vadd.f32 %v324, %v429
      %v431 = vpop.f32.mrb[0].mxu0
      %v432 = vpop.f32.mrb[0].mxu0
      %v433 = vadd.f32 %v324, %v432
      %v434 = vpop.f32.mrb[0].mxu0
      %435 = vmatprep.mubr.bf16.mxu0 0
      %436 = vmatmul.mubr.bf16.gmra.mrb[0].mxu0 %v337
      %v437 = vpop.f32.mrb[0].mxu0
      %v438 = vadd.f32 %v324, %v437
      %v439 = vpop.f32.mrb[0].mxu0
      %v440 = vpop.f32.mrb[0].mxu0
      %v441 = vadd.f32 %v324, %v440
      %v442 = vpop.f32.mrb[0].mxu0
      %443 = vmatprep.mubr.bf16.mxu0 0
      %444 = vmatmul.mubr.bf16.gmra.mrb[0].mxu0 %v340
      %v445 = vpop.f32.mrb[0].mxu0
      %v446 = vadd.f32 %v324, %v445
      %v447 = vpop.f32.mrb[0].mxu0
      %v448 = vpop.f32.mrb[0].mxu0
      %v449 = vadd.f32 %v324, %v448
      %v450 = vpop.f32.mrb[0].mxu0
      %451 = vmatprep.mubr.bf16.mxu0 0
      %452 = vmatmul.mubr.bf16.gmra.mrb[0].mxu0 %v343
      %v453 = vpop.f32.mrb[0].mxu0
      %v454 = vadd.f32 %v324, %v453
      %v455 = vpop.f32.mrb[0].mxu0
      %v456 = vpop.f32.mrb[0].mxu0
      %v457 = vadd.f32 %v324, %v456
      %v458 = vpop.f32.mrb[0].mxu0
      %459 = vmatprep.mubr.bf16.mxu0 0
      %460 = vmatmul.mubr.bf16.gmra.mrb[0].mxu0 %v346
      %v461 = vpop.f32.mrb[0].mxu0
      %v462 = vadd.f32 %v324, %v461
      %v463 = vpop.f32.mrb[0].mxu0
      %v464 = vpop.f32.mrb[0].mxu0
      %v465 = vadd.f32 %v324, %v464
      %v466 = vpop.f32.mrb[0].mxu0
      %467 = vmatprep.mubr.bf16.mxu0 0
      %468 = vmatmul.mubr.bf16.gmra.mrb[0].mxu0 %v349
      %v469 = vpop.f32.mrb[0].mxu0
      %v470 = vadd.f32 %v324, %v469
      %v471 = vpop.f32.mrb[0].mxu0
      %v472 = vpop.f32.mrb[0].mxu0
      %v473 = vadd.f32 %v324, %v472
      %v474 = vpop.f32.mrb[0].mxu0
      %475 = vmatprep.mubr.bf16.mxu0 0
      %476 = vmatmul.mubr.bf16.gmra.mrb[0].mxu0 %v352
      %v477 = vpop.f32.mrb[0].mxu0
      %v478 = vadd.f32 %v324, %v477
      %v479 = vpop.f32.mrb[0].mxu0
      %v480 = vpop.f32.mrb[0].mxu0
      %v481 = vadd.f32 %v324, %v480
      %v482 = vpop.f32.mrb[0].mxu0
      %483 = vmatprep.mubr.bf16.mxu0 0
      %484 = vmatmul.mubr.bf16.gmra.mrb[0].mxu0 %v355
      %v485 = vpop.f32.mrb[0].mxu0
      %v486 = vadd.f32 %v324, %v485
      %v487 = vpop.f32.mrb[0].mxu0
      %v488 = vpop.f32.mrb[0].mxu0
      %v489 = vadd.f32 %v324, %v488
      %v490 = vpop.f32.mrb[0].mxu0
      %491 = vmatprep.mubr.bf16.mxu0 0
      %492 = vmatmul.mubr.bf16.gmra.mrb[0].mxu0 %v358
      %v493 = vpop.f32.mrb[0].mxu0
      %v494 = vadd.f32 %v324, %v493
      %v495 = vpop.f32.mrb[0].mxu0
      %v496 = vpop.f32.mrb[0].mxu0
      %v497 = vadd.f32 %v324, %v496
      %v498 = vpop.f32.mrb[0].mxu0
      %499 = vmatprep.mubr.bf16.mxu0 0
      %500 = vmatmul.mubr.bf16.gmra.mrb[0].mxu0 %v361
      %v501 = vpop.f32.mrb[0].mxu0
      %v502 = vadd.f32 %v324, %v501
      %v503 = vpop.f32.mrb[0].mxu0
      %v504 = vpop.f32.mrb[0].mxu0
      %v505 = vadd.f32 %v324, %v504
      %v506 = vpop.f32.mrb[0].mxu0
      %507 = vmatprep.mubr.bf16.mxu0 0
      %508 = vmatmul.mubr.bf16.gmra.mrb[0].mxu0 %v364
      %v509 = vpop.f32.mrb[0].mxu0
      %v510 = vadd.f32 %v324, %v509
      %v511 = vpop.f32.mrb[0].mxu0
      %v512 = vpop.f32.mrb[0].mxu0
      %v513 = vadd.f32 %v324, %v512
      %v514 = vpop.f32.mrb[0].mxu0
      %515 = vmatprep.mubr.bf16.mxu0 0
      %516 = vmatmul.mubr.bf16.gmra.mrb[0].mxu0 %v367
      %v517 = vpop.f32.mrb[0].mxu0
      %v518 = vadd.f32 %v324, %v517
      %v519 = vpop.f32.mrb[0].mxu0
      %v520 = vpop.f32.mrb[0].mxu0
      %v521 = vadd.f32 %v324, %v520
      %v522 = vpop.f32.mrb[0].mxu0
      %523 = vmatprep.mubr.bf16.mxu0 0
      %524 = vmatmul.mubr.bf16.gmra.mrb[0].mxu0 %v370
      %v525 = vpop.f32.mrb[0].mxu0
      %v526 = vadd.f32 %v324, %v525
      %v527 = vpop.f32.mrb[0].mxu0
      %v528 = vpop.f32.mrb[0].mxu0
      %v529 = vadd.f32 %v324, %v528
      %v530 = vpop.f32.mrb[0].mxu0
      %531 = vmatprep.mubr.bf16.mxu0 0
      %532 = vmatmul.mubr.bf16.gmra.mrb[0].mxu0 %v373
      %v533 = vpop.f32.mrb[0].mxu0
      %v534 = vadd.f32 %v324, %v533
      %v535 = vpop.f32.mrb[0].mxu0
      %v536 = vpop.f32.mrb[0].mxu0
      %v537 = vadd.f32 %v324, %v536
      %v538 = vpop.f32.mrb[0].mxu0
      %539 = vdwg.mxu0
      %vm540 = vcmask 261120
      %541 = vst.msk [vmem:[%s261] sm:$0xff] %vm540, %v414
      %542 = vst.msk [vmem:[%s261 + $0x8] sm:$0xff] %vm540, %v417
      %543 = vst.msk [vmem:[%s261 + $0x10] sm:$0xff] %vm540, %v422
      %544 = vst.msk [vmem:[%s261 + $0x18] sm:$0xff] %vm540, %v425
      %545 = vst.msk [vmem:[%s261 + $0x20] sm:$0xff] %vm540, %v430
      %546 = vst.msk [vmem:[%s261 + $0x28] sm:$0xff] %vm540, %v433
      %547 = vst.msk [vmem:[%s261 + $0x30] sm:$0xff] %vm540, %v438
      %548 = vst.msk [vmem:[%s261 + $0x38] sm:$0xff] %vm540, %v441
      %549 = vst.msk [vmem:[%s261 + $0x40] sm:$0xff] %vm540, %v446
      %550 = vst.msk [vmem:[%s261 + $0x48] sm:$0xff] %vm540, %v449
      %551 = vst.msk [vmem:[%s261 + $0x50] sm:$0xff] %vm540, %v454
      %552 = vst.msk [vmem:[%s261 + $0x58] sm:$0xff] %vm540, %v457
      %553 = vst.msk [vmem:[%s261 + $0x60] sm:$0xff] %vm540, %v462
      %554 = vst.msk [vmem:[%s261 + $0x68] sm:$0xff] %vm540, %v465
      %555 = vst.msk [vmem:[%s261 + $0x70] sm:$0xff] %vm540, %v470
      %556 = vst.msk [vmem:[%s261 + $0x78] sm:$0xff] %vm540, %v473
      %557 = vst.msk [vmem:[%s261 + $0x80] sm:$0xff] %vm540, %v478
      %558 = vst.msk [vmem:[%s261 + $0x88] sm:$0xff] %vm540, %v481
      %559 = vst.msk [vmem:[%s261 + $0x90] sm:$0xff] %vm540, %v486
      %560 = vst.msk [vmem:[%s261 + $0x98] sm:$0xff] %vm540, %v489
      %561 = vst.msk [vmem:[%s261 + $0xa0] sm:$0xff] %vm540, %v494
      %562 = vst.msk [vmem:[%s261 + $0xa8] sm:$0xff] %vm540, %v497
      %563 = vst.msk [vmem:[%s261 + $0xb0] sm:$0xff] %vm540, %v502
      %564 = vst.msk [vmem:[%s261 + $0xb8] sm:$0xff] %vm540, %v505
      %565 = vst.msk [vmem:[%s261 + $0xc0] sm:$0xff] %vm540, %v510
      %566 = vst.msk [vmem:[%s261 + $0xc8] sm:$0xff] %vm540, %v513
      %567 = vst.msk [vmem:[%s261 + $0xd0] sm:$0xff] %vm540, %v518
      %568 = vst.msk [vmem:[%s261 + $0xd8] sm:$0xff] %vm540, %v521
      %569 = vst.msk [vmem:[%s261 + $0xe0] sm:$0xff] %vm540, %v526
      %570 = vst.msk [vmem:[%s261 + $0xe8] sm:$0xff] %vm540, %v529
      %571 = vst.msk [vmem:[%s261 + $0xf0] sm:$0xff] %vm540, %v534
      %572 = vst.msk [vmem:[%s261 + $0xf8] sm:$0xff] %vm540, %v537
      %v573 = vsel %vm540, %v414, 0.0
      %574 = vadd.xlane.f32.xlu0 %v573
      %v575 = vpop.xlane.xlu0 %574
      %v576 = vsel %vm540, %v417, 0.0
      %577 = vadd.xlane.f32.xlu0 %v576
      %v578 = vpop.xlane.xlu0 %577
      %v579 = vsel %vm540, %v422, 0.0
      %580 = vadd.xlane.f32.xlu0 %v579
      %v581 = vpop.xlane.xlu0 %580
      %v582 = vsel %vm540, %v425, 0.0
      %583 = vadd.xlane.f32.xlu0 %v582
      %v584 = vpop.xlane.xlu0 %583
      %v585 = vsel %vm540, %v430, 0.0
      %586 = vadd.xlane.f32.xlu0 %v585
      %v587 = vpop.xlane.xlu0 %586
      %v588 = vsel %vm540, %v433, 0.0
      %589 = vadd.xlane.f32.xlu0 %v588
      %v590 = vpop.xlane.xlu0 %589
      %v591 = vsel %vm540, %v438, 0.0
      %592 = vadd.xlane.f32.xlu0 %v591
      %v593 = vpop.xlane.xlu0 %592
      %v594 = vsel %vm540, %v441, 0.0
      %595 = vadd.xlane.f32.xlu0 %v594
      %v596 = vpop.xlane.xlu0 %595
      %v597 = vsel %vm540, %v446, 0.0
      %598 = vadd.xlane.f32.xlu0 %v597
      %v599 = vpop.xlane.xlu0 %598
      %v600 = vsel %vm540, %v449, 0.0
      %601 = vadd.xlane.f32.xlu0 %v600
      %v602 = vpop.xlane.xlu0 %601
      %v603 = vsel %vm540, %v454, 0.0
      %604 = vadd.xlane.f32.xlu0 %v603
      %v605 = vpop.xlane.xlu0 %604
      %v606 = vsel %vm540, %v457, 0.0
      %607 = vadd.xlane.f32.xlu0 %v606
      %v608 = vpop.xlane.xlu0 %607
      %v609 = vsel %vm540, %v462, 0.0
      %610 = vadd.xlane.f32.xlu0 %v609
      %v611 = vpop.xlane.xlu0 %610
      %v612 = vsel %vm540, %v465, 0.0
      %613 = vadd.xlane.f32.xlu0 %v612
      %v614 = vpop.xlane.xlu0 %613
      %v615 = vsel %vm540, %v470, 0.0
      %616 = vadd.xlane.f32.xlu0 %v615
      %v617 = vpop.xlane.xlu0 %616
      %v618 = vsel %vm540, %v473, 0.0
      %619 = vadd.xlane.f32.xlu0 %v618
      %v620 = vpop.xlane.xlu0 %619
      %v621 = vsel %vm540, %v478, 0.0
      %622 = vadd.xlane.f32.xlu0 %v621
      %v623 = vpop.xlane.xlu0 %622
      %v624 = vsel %vm540, %v481, 0.0
      %625 = vadd.xlane.f32.xlu0 %v624
      %v626 = vpop.xlane.xlu0 %625
      %v627 = vsel %vm540, %v486, 0.0
      %628 = vadd.xlane.f32.xlu0 %v627
      %v629 = vpop.xlane.xlu0 %628
      %v630 = vsel %vm540, %v489, 0.0
      %631 = vadd.xlane.f32.xlu0 %v630
      %v632 = vpop.xlane.xlu0 %631
      %v633 = vsel %vm540, %v494, 0.0
      %634 = vadd.xlane.f32.xlu0 %v633
      %v635 = vpop.xlane.xlu0 %634
      %v636 = vsel %vm540, %v497, 0.0
      %637 = vadd.xlane.f32.xlu0 %v636
      %v638 = vpop.xlane.xlu0 %637
      %v639 = vsel %vm540, %v502, 0.0
      %640 = vadd.xlane.f32.xlu0 %v639
      %v641 = vpop.xlane.xlu0 %640
      %v642 = vsel %vm540, %v505, 0.0
      %643 = vadd.xlane.f32.xlu0 %v642
      %v644 = vpop.xlane.xlu0 %643
      %v645 = vsel %vm540, %v510, 0.0
      %646 = vadd.xlane.f32.xlu0 %v645
      %v647 = vpop.xlane.xlu0 %646
      %v648 = vsel %vm540, %v513, 0.0
      %649 = vadd.xlane.f32.xlu0 %v648
      %v650 = vpop.xlane.xlu0 %649
      %v651 = vsel %vm540, %v518, 0.0
      %652 = vadd.xlane.f32.xlu0 %v651
      %v653 = vpop.xlane.xlu0 %652
      %v654 = vsel %vm540, %v521, 0.0
      %655 = vadd.xlane.f32.xlu0 %v654
      %v656 = vpop.xlane.xlu0 %655
      %v657 = vsel %vm540, %v526, 0.0
      %658 = vadd.xlane.f32.xlu0 %v657
      %v659 = vpop.xlane.xlu0 %658
      %v660 = vsel %vm540, %v529, 0.0
      %661 = vadd.xlane.f32.xlu0 %v660
      %v662 = vpop.xlane.xlu0 %661
      %v663 = vsel %vm540, %v534, 0.0
      %664 = vadd.xlane.f32.xlu0 %v663
      %v665 = vpop.xlane.xlu0 %664
      %v666 = vsel %vm540, %v537, 0.0
      %667 = vadd.xlane.f32.xlu0 %v666
      %v668 = vpop.xlane.xlu0 %667
      %v669 = vrcp.pop 32.0
      %v670 = vmul.f32 %v575, %v669
      %v671 = vmul.f32 %v578, %v669
      %v672 = vmul.f32 %v581, %v669
      %v673 = vmul.f32 %v584, %v669
      %v674 = vmul.f32 %v587, %v669
      %v675 = vmul.f32 %v590, %v669
      %v676 = vmul.f32 %v593, %v669
      %v677 = vmul.f32 %v596, %v669
      %v678 = vmul.f32 %v599, %v669
      %v679 = vmul.f32 %v602, %v669
      %v680 = vmul.f32 %v605, %v669
      %v681 = vmul.f32 %v608, %v669
      %v682 = vmul.f32 %v611, %v669
      %v683 = vmul.f32 %v614, %v669
      %v684 = vmul.f32 %v617, %v669
      %v685 = vmul.f32 %v620, %v669
      %v686 = vmul.f32 %v623, %v669
      %v687 = vmul.f32 %v626, %v669
      %v688 = vmul.f32 %v629, %v669
      %v689 = vmul.f32 %v632, %v669
      %v690 = vmul.f32 %v635, %v669
      %v691 = vmul.f32 %v638, %v669
      %v692 = vmul.f32 %v641, %v669
      %v693 = vmul.f32 %v644, %v669
      %v694 = vmul.f32 %v647, %v669
      %v695 = vmul.f32 %v650, %v669
      %v696 = vmul.f32 %v653, %v669
      %v697 = vmul.f32 %v656, %v669
      %v698 = vmul.f32 %v659, %v669
      %v699 = vmul.f32 %v662, %v669
      %v700 = vmul.f32 %v665, %v669
      %v701 = vmul.f32 %v668, %v669
      %v702 = vsub.f32 %v414, %v670
      %v703 = vsub.f32 %v417, %v671
      %v704 = vsub.f32 %v422, %v672
      %v705 = vsub.f32 %v425, %v673
      %v706 = vsub.f32 %v430, %v674
      %v707 = vsub.f32 %v433, %v675
      %v708 = vsub.f32 %v438, %v676
      %v709 = vsub.f32 %v441, %v677
      %v710 = vsub.f32 %v446, %v678
      %v711 = vsub.f32 %v449, %v679
      %v712 = vsub.f32 %v454, %v680
      %v713 = vsub.f32 %v457, %v681
      %v714 = vsub.f32 %v462, %v682
      %v715 = vsub.f32 %v465, %v683
      %v716 = vsub.f32 %v470, %v684
      %v717 = vsub.f32 %v473, %v685
      %v718 = vsub.f32 %v478, %v686
      %v719 = vsub.f32 %v481, %v687
      %v720 = vsub.f32 %v486, %v688
      %v721 = vsub.f32 %v489, %v689
      %v722 = vsub.f32 %v494, %v690
      %v723 = vsub.f32 %v497, %v691
      %v724 = vsub.f32 %v502, %v692
      %v725 = vsub.f32 %v505, %v693
      %v726 = vsub.f32 %v510, %v694
      %v727 = vsub.f32 %v513, %v695
      %v728 = vsub.f32 %v518, %v696
      %v729 = vsub.f32 %v521, %v697
      %v730 = vsub.f32 %v526, %v698
      %v731 = vsub.f32 %v529, %v699
      %v732 = vsub.f32 %v534, %v700
      %v733 = vsub.f32 %v537, %v701
      %v734 = vmul.f32 %v702, %v702
      %v735 = vmul.f32 %v703, %v703
      %v736 = vmul.f32 %v704, %v704
      %v737 = vmul.f32 %v705, %v705
      %v738 = vmul.f32 %v706, %v706
      %v739 = vmul.f32 %v707, %v707
      %v740 = vmul.f32 %v708, %v708
      %v741 = vmul.f32 %v709, %v709
      %v742 = vmul.f32 %v710, %v710
      %v743 = vmul.f32 %v711, %v711
      %v744 = vmul.f32 %v712, %v712
      %v745 = vmul.f32 %v713, %v713
      %v746 = vmul.f32 %v714, %v714
      %v747 = vmul.f32 %v715, %v715
      %v748 = vmul.f32 %v716, %v716
      %v749 = vmul.f32 %v717, %v717
      %v750 = vmul.f32 %v718, %v718
      %v751 = vmul.f32 %v719, %v719
      %v752 = vmul.f32 %v720, %v720
      %v753 = vmul.f32 %v721, %v721
      %v754 = vmul.f32 %v722, %v722
      %v755 = vmul.f32 %v723, %v723
      %v756 = vmul.f32 %v724, %v724
      %v757 = vmul.f32 %v725, %v725
      %v758 = vmul.f32 %v726, %v726
      %v759 = vmul.f32 %v727, %v727
      %v760 = vmul.f32 %v728, %v728
      %v761 = vmul.f32 %v729, %v729
      %v762 = vmul.f32 %v730, %v730
      %v763 = vmul.f32 %v731, %v731
      %v764 = vmul.f32 %v732, %v732
      %v765 = vmul.f32 %v733, %v733
      %v766 = vsel %vm540, %v734, 0.0
      %767 = vadd.xlane.f32.xlu0 %v766
      %v768 = vpop.xlane.xlu0 %767
      %v769 = vsel %vm540, %v735, 0.0
      %770 = vadd.xlane.f32.xlu0 %v769
      %v771 = vpop.xlane.xlu0 %770
      %v772 = vsel %vm540, %v736, 0.0
      %773 = vadd.xlane.f32.xlu0 %v772
      %v774 = vpop.xlane.xlu0 %773
      %v775 = vsel %vm540, %v737, 0.0
      %776 = vadd.xlane.f32.xlu0 %v775
      %v777 = vpop.xlane.xlu0 %776
      %v778 = vsel %vm540, %v738, 0.0
      %779 = vadd.xlane.f32.xlu0 %v778
      %v780 = vpop.xlane.xlu0 %779
      %v781 = vsel %vm540, %v739, 0.0
      %782 = vadd.xlane.f32.xlu0 %v781
      %v783 = vpop.xlane.xlu0 %782
      %v784 = vsel %vm540, %v740, 0.0
      %785 = vadd.xlane.f32.xlu0 %v784
      %v786 = vpop.xlane.xlu0 %785
      %v787 = vsel %vm540, %v741, 0.0
      %788 = vadd.xlane.f32.xlu0 %v787
      %v789 = vpop.xlane.xlu0 %788
      %v790 = vsel %vm540, %v742, 0.0
      %791 = vadd.xlane.f32.xlu0 %v790
      %v792 = vpop.xlane.xlu0 %791
      %v793 = vsel %vm540, %v743, 0.0
      %794 = vadd.xlane.f32.xlu0 %v793
      %v795 = vpop.xlane.xlu0 %794
      %v796 = vsel %vm540, %v744, 0.0
      %797 = vadd.xlane.f32.xlu0 %v796
      %v798 = vpop.xlane.xlu0 %797
      %v799 = vsel %vm540, %v745, 0.0
      %800 = vadd.xlane.f32.xlu0 %v799
      %v801 = vpop.xlane.xlu0 %800
      %v802 = vsel %vm540, %v746, 0.0
      %803 = vadd.xlane.f32.xlu0 %v802
      %v804 = vpop.xlane.xlu0 %803
      %v805 = vsel %vm540, %v747, 0.0
      %806 = vadd.xlane.f32.xlu0 %v805
      %v807 = vpop.xlane.xlu0 %806
      %v808 = vsel %vm540, %v748, 0.0
      %809 = vadd.xlane.f32.xlu0 %v808
      %v810 = vpop.xlane.xlu0 %809
      %v811 = vsel %vm540, %v749, 0.0
      %812 = vadd.xlane.f32.xlu0 %v811
      %v813 = vpop.xlane.xlu0 %812
      %v814 = vsel %vm540, %v750, 0.0
      %815 = vadd.xlane.f32.xlu0 %v814
      %v816 = vpop.xlane.xlu0 %815
      %v817 = vsel %vm540, %v751, 0.0
      %818 = vadd.xlane.f32.xlu0 %v817
      %v819 = vpop.xlane.xlu0 %818
      %v820 = vsel %vm540, %v752, 0.0
      %821 = vadd.xlane.f32.xlu0 %v820
      %v822 = vpop.xlane.xlu0 %821
      %v823 = vsel %vm540, %v753, 0.0
      %824 = vadd.xlane.f32.xlu0 %v823
      %v825 = vpop.xlane.xlu0 %824
      %v826 = vsel %vm540, %v754, 0.0
      %827 = vadd.xlane.f32.xlu0 %v826
      %v828 = vpop.xlane.xlu0 %827
      %v829 = vsel %vm540, %v755, 0.0
      %830 = vadd.xlane.f32.xlu0 %v829
      %v831 = vpop.xlane.xlu0 %830
      %v832 = vsel %vm540, %v756, 0.0
      %833 = vadd.xlane.f32.xlu0 %v832
      %v834 = vpop.xlane.xlu0 %833
      %v835 = vsel %vm540, %v757, 0.0
      %836 = vadd.xlane.f32.xlu0 %v835
      %v837 = vpop.xlane.xlu0 %836
      %v838 = vsel %vm540, %v758, 0.0
      %839 = vadd.xlane.f32.xlu0 %v838
      %v840 = vpop.xlane.xlu0 %839
      %v841 = vsel %vm540, %v759, 0.0
      %842 = vadd.xlane.f32.xlu0 %v841
      %v843 = vpop.xlane.xlu0 %842
      %v844 = vsel %vm540, %v760, 0.0
      %845 = vadd.xlane.f32.xlu0 %v844
      %v846 = vpop.xlane.xlu0 %845
      %v847 = vsel %vm540, %v761, 0.0
      %848 = vadd.xlane.f32.xlu0 %v847
      %v849 = vpop.xlane.xlu0 %848
      %v850 = vsel %vm540, %v762, 0.0
      %851 = vadd.xlane.f32.xlu0 %v850
      %v852 = vpop.xlane.xlu0 %851
      %v853 = vsel %vm540, %v763, 0.0
      %854 = vadd.xlane.f32.xlu0 %v853
      %v855 = vpop.xlane.xlu0 %854
      %v856 = vsel %vm540, %v764, 0.0
      %857 = vadd.xlane.f32.xlu0 %v856
      %v858 = vpop.xlane.xlu0 %857
      %v859 = vsel %vm540, %v765, 0.0
      %860 = vadd.xlane.f32.xlu0 %v859
      %v861 = vpop.xlane.xlu0 %860
      %v862 = vmul.f32 %v768, %v669
      %v863 = vmul.f32 %v771, %v669
      %v864 = vmul.f32 %v774, %v669
      %v865 = vmul.f32 %v777, %v669
      %v866 = vmul.f32 %v780, %v669
      %v867 = vmul.f32 %v783, %v669
      %v868 = vmul.f32 %v786, %v669
      %v869 = vmul.f32 %v789, %v669
      %v870 = vmul.f32 %v792, %v669
      %v871 = vmul.f32 %v795, %v669
      %v872 = vmul.f32 %v798, %v669
      %v873 = vmul.f32 %v801, %v669
      %v874 = vmul.f32 %v804, %v669
      %v875 = vmul.f32 %v807, %v669
      %v876 = vmul.f32 %v810, %v669
      %v877 = vmul.f32 %v813, %v669
      %v878 = vmul.f32 %v816, %v669
      %v879 = vmul.f32 %v819, %v669
      %v880 = vmul.f32 %v822, %v669
      %v881 = vmul.f32 %v825, %v669
      %v882 = vmul.f32 %v828, %v669
      %v883 = vmul.f32 %v831, %v669
      %v884 = vmul.f32 %v834, %v669
      %v885 = vmul.f32 %v837, %v669
      %v886 = vmul.f32 %v840, %v669
      %v887 = vmul.f32 %v843, %v669
      %v888 = vmul.f32 %v846, %v669
      %v889 = vmul.f32 %v849, %v669
      %v890 = vmul.f32 %v852, %v669
      %v891 = vmul.f32 %v855, %v669
      %v892 = vmul.f32 %v858, %v669
      %v893 = vmul.f32 %v861, %v669
      %v894 = vadd.f32 %v862, 1e-05
      %v895 = vadd.f32 %v863, 1e-05
      %v896 = vadd.f32 %v864, 1e-05
      %v897 = vadd.f32 %v865, 1e-05
      %v898 = vadd.f32 %v866, 1e-05
      %v899 = vadd.f32 %v867, 1e-05
      %v900 = vadd.f32 %v868, 1e-05
      %v901 = vadd.f32 %v869, 1e-05
      %v902 = vadd.f32 %v870, 1e-05
      %v903 = vadd.f32 %v871, 1e-05
      %v904 = vadd.f32 %v872, 1e-05
      %v905 = vadd.f32 %v873, 1e-05
      %v906 = vadd.f32 %v874, 1e-05
      %v907 = vadd.f32 %v875, 1e-05
      %v908 = vadd.f32 %v876, 1e-05
      %v909 = vadd.f32 %v877, 1e-05
      %v910 = vadd.f32 %v878, 1e-05
      %v911 = vadd.f32 %v879, 1e-05
      %v912 = vadd.f32 %v880, 1e-05
      %v913 = vadd.f32 %v881, 1e-05
      %v914 = vadd.f32 %v882, 1e-05
      %v915 = vadd.f32 %v883, 1e-05
      %v916 = vadd.f32 %v884, 1e-05
      %v917 = vadd.f32 %v885, 1e-05
      %v918 = vadd.f32 %v886, 1e-05
      %v919 = vadd.f32 %v887, 1e-05
      %v920 = vadd.f32 %v888, 1e-05
      %v921 = vadd.f32 %v889, 1e-05
      %v922 = vadd.f32 %v890, 1e-05
      %v923 = vadd.f32 %v891, 1e-05
      %v924 = vadd.f32 %v892, 1e-05
      %v925 = vadd.f32 %v893, 1e-05
      %v926 = vrsqrt.pop %v894
      %v927 = vrsqrt.pop %v895
      %v928 = vrsqrt.pop %v896
      %v929 = vrsqrt.pop %v897
      %v930 = vrsqrt.pop %v898
      %v931 = vrsqrt.pop %v899
      %v932 = vrsqrt.pop %v900
      %v933 = vrsqrt.pop %v901
      %v934 = vrsqrt.pop %v902
      %v935 = vrsqrt.pop %v903
      %v936 = vrsqrt.pop %v904
      %v937 = vrsqrt.pop %v905
      %v938 = vrsqrt.pop %v906
      %v939 = vrsqrt.pop %v907
      %v940 = vrsqrt.pop %v908
      %v941 = vrsqrt.pop %v909
      %v942 = vrsqrt.pop %v910
      %v943 = vrsqrt.pop %v911
      %v944 = vrsqrt.pop %v912
      %v945 = vrsqrt.pop %v913
      %v946 = vrsqrt.pop %v914
      %v947 = vrsqrt.pop %v915
      %v948 = vrsqrt.pop %v916
      %v949 = vrsqrt.pop %v917
      %v950 = vrsqrt.pop %v918
      %v951 = vrsqrt.pop %v919
      %v952 = vrsqrt.pop %v920
      %v953 = vrsqrt.pop %v921
      %v954 = vrsqrt.pop %v922
      %v955 = vrsqrt.pop %v923
      %v956 = vrsqrt.pop %v924
      %v957 = vrsqrt.pop %v925
      %v958 = vmul.f32 %v702, %v926
      %v959 = vmul.f32 %v703, %v927
      %v960 = vmul.f32 %v704, %v928
      %v961 = vmul.f32 %v705, %v929
      %v962 = vmul.f32 %v706, %v930
      %v963 = vmul.f32 %v707, %v931
      %v964 = vmul.f32 %v708, %v932
      %v965 = vmul.f32 %v709, %v933
      %v966 = vmul.f32 %v710, %v934
      %v967 = vmul.f32 %v711, %v935
      %v968 = vmul.f32 %v712, %v936
      %v969 = vmul.f32 %v713, %v937
      %v970 = vmul.f32 %v714, %v938
      %v971 = vmul.f32 %v715, %v939
      %v972 = vmul.f32 %v716, %v940
      %v973 = vmul.f32 %v717, %v941
      %v974 = vmul.f32 %v718, %v942
      %v975 = vmul.f32 %v719, %v943
      %v976 = vmul.f32 %v720, %v944
      %v977 = vmul.f32 %v721, %v945
      %v978 = vmul.f32 %v722, %v946
      %v979 = vmul.f32 %v723, %v947
      %v980 = vmul.f32 %v724, %v948
      %v981 = vmul.f32 %v725, %v949
      %v982 = vmul.f32 %v726, %v950
      %v983 = vmul.f32 %v727, %v951
      %v984 = vmul.f32 %v728, %v952
      %v985 = vmul.f32 %v729, %v953
      %v986 = vmul.f32 %v730, %v954
      %v987 = vmul.f32 %v731, %v955
      %v988 = vmul.f32 %v732, %v956
      %v989 = vmul.f32 %v733, %v957
      %v990 = vld [vmem:[%s3] sm:$0x1]
      %v992 = vlaneseq
      %v993 = vshrl.u32 %v992, 7
      %v994 = vsub.s32 0, %v993
      %v995 = vrot.slane %v990, %v994
      %v997 = vmul.f32 %v958, %v995
      %v998 = vmul.f32 %v959, %v995
      %v999 = vmul.f32 %v960, %v995
      %v1000 = vmul.f32 %v961, %v995
      %v1001 = vmul.f32 %v962, %v995
      %v1002 = vmul.f32 %v963, %v995
      %v1003 = vmul.f32 %v964, %v995
      %v1004 = vmul.f32 %v965, %v995
      %v1005 = vmul.f32 %v966, %v995
      %v1006 = vmul.f32 %v967, %v995
      %v1007 = vmul.f32 %v968, %v995
      %v1008 = vmul.f32 %v969, %v995
      %v1009 = vmul.f32 %v970, %v995
      %v1010 = vmul.f32 %v971, %v995
      %v1011 = vmul.f32 %v972, %v995
      %v1012 = vmul.f32 %v973, %v995
      %v1013 = vmul.f32 %v974, %v995
      %v1014 = vmul.f32 %v975, %v995
      %v1015 = vmul.f32 %v976, %v995
      %v1016 = vmul.f32 %v977, %v995
      %v1017 = vmul.f32 %v978, %v995
      %v1018 = vmul.f32 %v979, %v995
      %v1019 = vmul.f32 %v980, %v995
      %v1020 = vmul.f32 %v981, %v995
      %v1021 = vmul.f32 %v982, %v995
      %v1022 = vmul.f32 %v983, %v995
      %v1023 = vmul.f32 %v984, %v995
      %v1024 = vmul.f32 %v985, %v995
      %v1025 = vmul.f32 %v986, %v995
      %v1026 = vmul.f32 %v987, %v995
      %v1027 = vmul.f32 %v988, %v995
      %v1028 = vmul.f32 %v989, %v995
      %v1029 = vld [vmem:[%s4] sm:$0x1]
      %v1031 = vlaneseq
      %v1032 = vshrl.u32 %v1031, 7
      %v1033 = vsub.s32 0, %v1032
      %v1034 = vrot.slane %v1029, %v1033
      %v1036 = vadd.f32 %v997, %v1034
      %v1037 = vadd.f32 %v998, %v1034
      %v1038 = vadd.f32 %v999, %v1034
      %v1039 = vadd.f32 %v1000, %v1034
      %v1040 = vadd.f32 %v1001, %v1034
      %v1041 = vadd.f32 %v1002, %v1034
      %v1042 = vadd.f32 %v1003, %v1034
      %v1043 = vadd.f32 %v1004, %v1034
      %v1044 = vadd.f32 %v1005, %v1034
      %v1045 = vadd.f32 %v1006, %v1034
      %v1046 = vadd.f32 %v1007, %v1034
      %v1047 = vadd.f32 %v1008, %v1034
      %v1048 = vadd.f32 %v1009, %v1034
      %v1049 = vadd.f32 %v1010, %v1034
      %v1050 = vadd.f32 %v1011, %v1034
      %v1051 = vadd.f32 %v1012, %v1034
      %v1052 = vadd.f32 %v1013, %v1034
      %v1053 = vadd.f32 %v1014, %v1034
      %v1054 = vadd.f32 %v1015, %v1034
      %v1055 = vadd.f32 %v1016, %v1034
      %v1056 = vadd.f32 %v1017, %v1034
      %v1057 = vadd.f32 %v1018, %v1034
      %v1058 = vadd.f32 %v1019, %v1034
      %v1059 = vadd.f32 %v1020, %v1034
      %v1060 = vadd.f32 %v1021, %v1034
      %v1061 = vadd.f32 %v1022, %v1034
      %v1062 = vadd.f32 %v1023, %v1034
      %v1063 = vadd.f32 %v1024, %v1034
      %v1064 = vadd.f32 %v1025, %v1034
      %v1065 = vadd.f32 %v1026, %v1034
      %v1066 = vadd.f32 %v1027, %v1034
      %v1067 = vadd.f32 %v1028, %v1034
      %1068 = vst.msk [vmem:[%s267] sm:$0xff] %vm540, %v1036
      %1069 = vst.msk [vmem:[%s267 + $0x8] sm:$0xff] %vm540, %v1037
      %1070 = vst.msk [vmem:[%s267 + $0x10] sm:$0xff] %vm540, %v1038
      %1071 = vst.msk [vmem:[%s267 + $0x18] sm:$0xff] %vm540, %v1039
      %1072 = vst.msk [vmem:[%s267 + $0x20] sm:$0xff] %vm540, %v1040
      %1073 = vst.msk [vmem:[%s267 + $0x28] sm:$0xff] %vm540, %v1041
      %1074 = vst.msk [vmem:[%s267 + $0x30] sm:$0xff] %vm540, %v1042
      %1075 = vst.msk [vmem:[%s267 + $0x38] sm:$0xff] %vm540, %v1043
      %1076 = vst.msk [vmem:[%s267 + $0x40] sm:$0xff] %vm540, %v1044
      %1077 = vst.msk [vmem:[%s267 + $0x48] sm:$0xff] %vm540, %v1045
      %1078 = vst.msk [vmem:[%s267 + $0x50] sm:$0xff] %vm540, %v1046
      %1079 = vst.msk [vmem:[%s267 + $0x58] sm:$0xff] %vm540, %v1047
      %1080 = vst.msk [vmem:[%s267 + $0x60] sm:$0xff] %vm540, %v1048
      %1081 = vst.msk [vmem:[%s267 + $0x68] sm:$0xff] %vm540, %v1049
      %1082 = vst.msk [vmem:[%s267 + $0x70] sm:$0xff] %vm540, %v1050
      %1083 = vst.msk [vmem:[%s267 + $0x78] sm:$0xff] %vm540, %v1051
      %1084 = vst.msk [vmem:[%s267 + $0x80] sm:$0xff] %vm540, %v1052
      %1085 = vst.msk [vmem:[%s267 + $0x88] sm:$0xff] %vm540, %v1053
      %1086 = vst.msk [vmem:[%s267 + $0x90] sm:$0xff] %vm540, %v1054
      %1087 = vst.msk [vmem:[%s267 + $0x98] sm:$0xff] %vm540, %v1055
      %1088 = vst.msk [vmem:[%s267 + $0xa0] sm:$0xff] %vm540, %v1056
      %1089 = vst.msk [vmem:[%s267 + $0xa8] sm:$0xff] %vm540, %v1057
      %1090 = vst.msk [vmem:[%s267 + $0xb0] sm:$0xff] %vm540, %v1058
      %1091 = vst.msk [vmem:[%s267 + $0xb8] sm:$0xff] %vm540, %v1059
      %1092 = vst.msk [vmem:[%s267 + $0xc0] sm:$0xff] %vm540, %v1060
      %1093 = vst.msk [vmem:[%s267 + $0xc8] sm:$0xff] %vm540, %v1061
      %1094 = vst.msk [vmem:[%s267 + $0xd0] sm:$0xff] %vm540, %v1062
      %1095 = vst.msk [vmem:[%s267 + $0xd8] sm:$0xff] %vm540, %v1063
      %1096 = vst.msk [vmem:[%s267 + $0xe0] sm:$0xff] %vm540, %v1064
      %1097 = vst.msk [vmem:[%s267 + $0xe8] sm:$0xff] %vm540, %v1065
      %1098 = vst.msk [vmem:[%s267 + $0xf0] sm:$0xff] %vm540, %v1066
      %1099 = vst.msk [vmem:[%s267 + $0xf8] sm:$0xff] %vm540, %v1067
      %s1100 = smul.u32 32, %s18
      %p1101 = scmp.lt.s32.totalorder %s1100, 63
      %s1102 = scalar_select %p1101, %s1100, 63
      %s1103 = smul.addr %s1102, 8
      %s1104 = scalar_lea.vmem %s5, %s1103
      %s1105 = smul.u32 32, %s18
      %p1106 = scmp.lt.s32.totalorder %s1105, 63
      %s1107 = scalar_select %p1106, %s1105, 63
      %s1108 = smul.addr %s1107, 8
      %s1109 = scalar_lea.vmem %s6, %s1108
      // Predicated region
      $region41: #{tpu_custom_call.1} parent=39 // pred_check
        %p1110 = pneg %p146
      $region42: #{tpu_custom_call.1} parent=39 // pred_check_branch
        %1112 = sbr.rel (%p1110) target = $region44
      $region43: #{tpu_custom_call.1} parent=39 // pred_region
        %s1113 = smul.u32 32, %s18
      $region44: #{tpu_custom_call.1} parent=39 // pred_fallthru
        _
      // Predicated region
      $region45: #{tpu_custom_call.1} parent=39 // pred_check
        %p1114 = pneg %p172
      $region46: #{tpu_custom_call.1} parent=39 // pred_check_branch
        %1116 = sbr.rel (%p1114) target = $region48
      $region47: #{tpu_custom_call.1} parent=39 // pred_region
        %s1117 = smul.u32 32, %s18
      $region48: #{tpu_custom_call.1} parent=39 // pred_fallthru
        _
    $region40: #{tpu_custom_call.1} parent=5 // pred_fallthru
      _
    %p1118 = scmp.le.s32.totalorder 2, %s13
    // Predicated region
    $region49: #{tpu_custom_call.1} parent=5 // pred_check
      %p1119 = pneg %p1118
    $region50: #{tpu_custom_call.1} parent=5 // pred_check_branch
      %1121 = sbr.rel (%p1119) target = $region52
    $region51: #{tpu_custom_call.1} parent=5 // pred_region
      %s1122 = ssub.s32 %s13, 2
      // Predicated region
      $region53: #{tpu_custom_call.1} parent=51 // pred_check
        %p1123 = pneg %p152
      $region54: #{tpu_custom_call.1} parent=51 // pred_check_branch
        %1125 = sbr.rel (%p1123) target = $region56
      $region55: #{tpu_custom_call.1} parent=51 // pred_region
        %s1126 = smul.u32 32, %s19
        %p1127 = scmp.lt.s32.totalorder %s1126, 63
        %s1128 = scalar_select %p1127, %s1126, 63
        %s1129 = smul.addr %s1128, 8
        %s1130 = scalar_lea.vmem %s5, %s1129
      $region56: #{tpu_custom_call.1} parent=51 // pred_fallthru
        _
      // Predicated region
      $region57: #{tpu_custom_call.1} parent=51 // pred_check
        %p1131 = pneg %p178
      $region58: #{tpu_custom_call.1} parent=51 // pred_check_branch
        %1133 = sbr.rel (%p1131) target = $region60
      $region59: #{tpu_custom_call.1} parent=51 // pred_region
        %s1134 = smul.u32 32, %s19
        %p1135 = scmp.lt.s32.totalorder %s1134, 63
        %s1136 = scalar_select %p1135, %s1134, 63
        %s1137 = smul.addr %s1136, 8
        %s1138 = scalar_lea.vmem %s6, %s1137
      $region60: #{tpu_custom_call.1} parent=51 // pred_fallthru
        _
    $region52: #{tpu_custom_call.1} parent=5 // pred_fallthru
      _
  $region6: #{tpu_custom_call.1} parent=0 // loop_footer
    %s17 = sadd.s32 1, %s13
  $region7: #{tpu_custom_call.1} parent=0 // loop_footer_branch
    %12 = sbr.rel target = $region3
  $region8: #{tpu_custom_call.1} parent=0 // loop_exit
    _

</llo_original>
